<compile_context>
chip_gen: v6e
topology: v6e:2x2x1
jax: 0.10.0
libtpu: 0.0.40
codegen_flags: <defaults>
</compile_context>

<pallas_src>
import functools

import jax
import jax.numpy as jnp
from jax.experimental import pallas as pl
from jax.experimental.pallas import tpu as pltpu


def _round_up(x, m):
    return (x + m - 1) // m * m


def _c7s1_kernel(x_ref, w_ref, m_ref, o_ref, patch_ref, *,
                 K, Wp, HWp_pad, cin, n_valid, eps):
    # x_ref:     (1, Cin, L)          bf16  reflect-padded, row-flattened activation (one image)
    # w_ref:     (Cout, K*K*Cin)      bf16  conv weight, column order (kh, kw, cin)
    # m_ref:     (1, HWp_pad)         f32   1.0 where the lane maps to a real output pixel
    # o_ref:     (1, Cout, HWp_pad)   f32   "wide" output; junk lanes dropped by the wrapper
    # patch_ref: (K*K*Cin, HWp_pad)   bf16  VMEM scratch: im2col patches built in-kernel
    x2d = x_ref[0]                                        # (Cin, L) bf16

    # Build the im2col patch matrix in VMEM.  Because padded rows are flattened,
    # tap (kh, kw) is a single 1-D lane offset kh*Wp + kw; for every valid output
    # lane (col % Wp < W, col < H*Wp) the slice never wraps into the next row,
    # and the zero tail on x keeps every tap slice in bounds.  All offsets are
    # static Python ints, so this unrolls to 49 slice-copies.
    for kh in range(K):
        for kw in range(K):
            t = kh * K + kw
            s = kh * Wp + kw
            patch_ref[t * cin:(t + 1) * cin, :] = x2d[:, s:s + HWp_pad]

    # One fat MXU matmul with f32 accumulation: (Cout, K*K*Cin) @ (K*K*Cin, HWp_pad).
    acc = jnp.dot(w_ref[...], patch_ref[...],
                  preferred_element_type=jnp.float32)      # (Cout, HWp_pad) f32

    # Conv bias intentionally omitted: instance-norm mean subtraction cancels it.

    # Single-pass moments over valid lanes only (biased variance, PyTorch-style).
    mask = m_ref[...]                                      # (1, HWp_pad) f32 in {0, 1}
    am = acc * mask
    inv_n = 1.0 / n_valid
    mean = jnp.sum(am, axis=1, keepdims=True) * inv_n      # (Cout, 1)
    var = jnp.sum(am * am, axis=1, keepdims=True) * inv_n - mean * mean

    # Fused normalize + ReLU, single elementwise pass over the accumulator.
    y = (acc - mean) * jax.lax.rsqrt(var + eps)
    o_ref[0] = jnp.maximum(y, 0.0).astype(o_ref.dtype)


def c7s1_block(x_nchw, weight, bias, *, K=7, pad=3, eps=1e-5):
    """x_nchw: (N, Cin, H, W); weight: (Cout, Cin, K, K) [PyTorch layout]; bias: (Cout,)."""
    del bias  # cancelled exactly by InstanceNorm2d(affine=False) mean subtraction
    N, Cin, H, W = x_nchw.shape
    Cout = weight.shape[0]
    assert H > pad and W > pad, "reflect padding requires H, W > pad"

    Hp, Wp = H + 2 * pad, W + 2 * pad
    HWp = H * Wp                                 # wide spatial extent (lane axis)
    HWp_pad = _round_up(HWp, 128)                # lane-dense: multiple of 128 -> unmasked vst
    KKC = K * K * Cin
    # Zero tail so every tap slice (max start (K-1)*Wp + (K-1), length HWp_pad)
    # stays in bounds; round up to a lane multiple for a clean input DMA.
    L = _round_up(max(Hp * Wp, (K - 1) * Wp + (K - 1) + HWp_pad), 128)

    # Reflect-pad in NCHW (no layout transpose anywhere), flatten padded rows,
    # append the zero tail, cast the MXU operand to bf16.
    x_pad = jnp.pad(x_nchw, ((0, 0), (0, 0), (pad, pad), (pad, pad)), mode="reflect")
    x_flat = x_pad.reshape(N, Cin, Hp * Wp)
    x_flat = jnp.pad(x_flat, ((0, 0), (0, 0), (0, L - Hp * Wp))).astype(jnp.bfloat16)

    # (Cout, Cin, KH, KW) -> (Cout, KH, KW, Cin) -> (Cout, K*K*Cin): column order (kh, kw, cin)
    w_mat = jnp.transpose(weight, (0, 2, 3, 1)).reshape(Cout, KKC).astype(jnp.bfloat16)

    # Lane-validity mask: wide column q maps to (h, w') = divmod(q, Wp); only
    # w' < W (and q < H*Wp) is a real output pixel.
    row_mask = jnp.concatenate([jnp.ones((W,), jnp.float32),
                                jnp.zeros((Wp - W,), jnp.float32)])
    mask = jnp.tile(row_mask, H)
    mask = jnp.pad(mask, (0, HWp_pad - HWp)).reshape(1, HWp_pad)

    kernel = functools.partial(_c7s1_kernel, K=K, Wp=Wp, HWp_pad=HWp_pad, cin=Cin,
                               n_valid=float(H * W), eps=eps)

    out_wide = pl.pallas_call(
        kernel,
        out_shape=jax.ShapeDtypeStruct((N, Cout, HWp_pad), jnp.float32),
        grid_spec=pltpu.PrefetchScalarGridSpec(
            num_scalar_prefetch=0,
            grid=(N,),
            in_specs=[
                pl.BlockSpec((1, Cin, L), lambda n: (n, 0, 0)),     # padded activation
                pl.BlockSpec((Cout, KKC), lambda n: (0, 0)),        # weight (resident)
                pl.BlockSpec((1, HWp_pad), lambda n: (0, 0)),       # validity mask
            ],
            out_specs=pl.BlockSpec((1, Cout, HWp_pad), lambda n: (n, 0, 0)),
            scratch_shapes=[pltpu.VMEM((KKC, HWp_pad), jnp.bfloat16)],
        ),
        compiler_params=pltpu.CompilerParams(
            dimension_semantics=("parallel",),
            vmem_limit_bytes=32 * 1024 * 1024,
        ),
    )(x_flat, w_mat, mask)

    # Drop the junk lanes and return NCHW directly (slice + reshape only).
    out = out_wide[:, :, :HWp].reshape(N, Cout, H, Wp)[:, :, :, :W]
    return out


def _reference(x_nchw, weight, bias, *, K=7, pad=3, eps=1e-5):
    """Pure-JAX f32 reference (conv+bias -> instance norm -> relu) matching PyTorch."""
    x_nhwc = jnp.transpose(x_nchw, (0, 2, 3, 1))
    x_p = jnp.pad(x_nhwc, ((0, 0), (pad, pad), (pad, pad), (0, 0)), mode="reflect")
    w_hwio = jnp.transpose(weight, (2, 3, 1, 0))  # (KH, KW, Cin, Cout)
    y = jax.lax.conv_general_dilated(
        x_p, w_hwio, window_strides=(1, 1), padding="VALID",
        dimension_numbers=("NHWC", "HWIO", "NHWC"))
    y = y + bias.reshape(1, 1, 1, -1)
    mean = jnp.mean(y, axis=(1, 2), keepdims=True)
    var = jnp.mean(jnp.square(y - mean), axis=(1, 2), keepdims=True)
    y = (y - mean) * jax.lax.rsqrt(var + eps)
    y = jnp.maximum(y, 0.0)
    return jnp.transpose(y, (0, 3, 1, 2))


if __name__ == "__main__":
    key = jax.random.PRNGKey(0)
    k_x, k_w, k_b = jax.random.split(key, 3)

    N, Cin, Cout, H, W, K = 2, 4, 8, 16, 16, 7

    x = jax.random.normal(k_x, (N, Cin, H, W), dtype=jnp.float32)
    bound = 1.0 / (Cin * K * K) ** 0.5
    weight = jax.random.uniform(k_w, (Cout, Cin, K, K), jnp.float32, -bound, bound)
    bias = jax.random.uniform(k_b, (Cout,), jnp.float32, -bound, bound)

    out = jax.block_until_ready(c7s1_block(x, weight, bias))
    ref = jax.block_until_ready(_reference(x, weight, bias))

    assert out.shape == (N, Cout, H, W)
    max_err = float(jnp.max(jnp.abs(out - ref)))
    # bf16 MXU operands vs pure-f32 reference => loose-but-meaningful tolerance.
    assert jnp.allclose(out, ref, atol=5e-2, rtol=2e-2), \
        f"mismatch vs JAX reference (max abs err {max_err})"

    print("KERNEL_OK")
</pallas_src>

<mosaic_0001>
module attributes {stable_mosaic.version = 11 : i64} {
  func.func @_c7s1_kernel(%arg0: i32, %arg1: memref<1x4x640xbf16, #tpu.memory_space<vmem>>, %arg2: memref<8x196xbf16, #tpu.memory_space<vmem>>, %arg3: memref<1x384xf32, #tpu.memory_space<vmem>>, %arg4: memref<1x8x384xf32, #tpu.memory_space<vmem>>, %arg5: memref<196x384xbf16, #tpu.memory_space<vmem>>) attributes {dimension_semantics = [#tpu.dimension_semantics<parallel>], iteration_bounds = array<i64: 2>, scalar_prefetch = 0 : i64, scratch_operands = 1 : i64, tpu.core_type = #tpu.core_type<tc>, window_params = [{transform_indices = @transform_0, window_bounds = array<i64: 1, 4, 640>}, {pipeline_mode = #tpu.pipeline_mode<synchronous>, transform_indices = @transform_1, window_bounds = array<i64: 8, 196>}, {pipeline_mode = #tpu.pipeline_mode<synchronous>, transform_indices = @transform_2, window_bounds = array<i64: 1, 384>}, {transform_indices = @transform_3, window_bounds = array<i64: 1, 8, 384>}]} {
    %c0 = arith.constant 0 : index
    %c0_0 = arith.constant 0 : index
    %c0_1 = arith.constant 0 : index
    %0 = vector.load %arg1[%c0, %c0_0, %c0_1] : memref<1x4x640xbf16, #tpu.memory_space<vmem>>, vector<1x4x640xbf16>
    %1 = vector.shape_cast %0 : vector<1x4x640xbf16> to vector<4x640xbf16>
    %2 = vector.extract_strided_slice %1 {offsets = [0, 0], sizes = [4, 384], strides = [1, 1]} : vector<4x640xbf16> to vector<4x384xbf16>
    %c0_2 = arith.constant 0 : index
    %c0_3 = arith.constant 0 : index
    %3 = vector.load %arg5[%c0_2, %c0_3] : memref<196x384xbf16, #tpu.memory_space<vmem>>, vector<4x384xbf16>
    tpu.vector_store %arg5[%c0_2, %c0_3], %2 {strides = array<i32>} : memref<196x384xbf16, #tpu.memory_space<vmem>>, vector<4x384xbf16>,
    %4 = vector.extract_strided_slice %1 {offsets = [0, 1], sizes = [4, 384], strides = [1, 1]} : vector<4x640xbf16> to vector<4x384xbf16>
    %c4 = arith.constant 4 : index
    %c0_4 = arith.constant 0 : index
    %5 = vector.load %arg5[%c4, %c0_4] : memref<196x384xbf16, #tpu.memory_space<vmem>>, vector<4x384xbf16>
    tpu.vector_store %arg5[%c4, %c0_4], %4 {strides = array<i32>} : memref<196x384xbf16, #tpu.memory_space<vmem>>, vector<4x384xbf16>,
    %6 = vector.extract_strided_slice %1 {offsets = [0, 2], sizes = [4, 384], strides = [1, 1]} : vector<4x640xbf16> to vector<4x384xbf16>
    %c8 = arith.constant 8 : index
    %c0_5 = arith.constant 0 : index
    %7 = vector.load %arg5[%c8, %c0_5] : memref<196x384xbf16, #tpu.memory_space<vmem>>, vector<4x384xbf16>
    tpu.vector_store %arg5[%c8, %c0_5], %6 {strides = array<i32>} : memref<196x384xbf16, #tpu.memory_space<vmem>>, vector<4x384xbf16>,
    %8 = vector.extract_strided_slice %1 {offsets = [0, 3], sizes = [4, 384], strides = [1, 1]} : vector<4x640xbf16> to vector<4x384xbf16>
    %c12 = arith.constant 12 : index
    %c0_6 = arith.constant 0 : index
    %9 = vector.load %arg5[%c12, %c0_6] : memref<196x384xbf16, #tpu.memory_space<vmem>>, vector<4x384xbf16>
    tpu.vector_store %arg5[%c12, %c0_6], %8 {strides = array<i32>} : memref<196x384xbf16, #tpu.memory_space<vmem>>, vector<4x384xbf16>,
    %10 = vector.extract_strided_slice %1 {offsets = [0, 4], sizes = [4, 384], strides = [1, 1]} : vector<4x640xbf16> to vector<4x384xbf16>
    %c16 = arith.constant 16 : index
    %c0_7 = arith.constant 0 : index
    %11 = vector.load %arg5[%c16, %c0_7] : memref<196x384xbf16, #tpu.memory_space<vmem>>, vector<4x384xbf16>
    tpu.vector_store %arg5[%c16, %c0_7], %10 {strides = array<i32>} : memref<196x384xbf16, #tpu.memory_space<vmem>>, vector<4x384xbf16>,
    %12 = vector.extract_strided_slice %1 {offsets = [0, 5], sizes = [4, 384], strides = [1, 1]} : vector<4x640xbf16> to vector<4x384xbf16>
    %c20 = arith.constant 20 : index
    %c0_8 = arith.constant 0 : index
    %13 = vector.load %arg5[%c20, %c0_8] : memref<196x384xbf16, #tpu.memory_space<vmem>>, vector<4x384xbf16>
    tpu.vector_store %arg5[%c20, %c0_8], %12 {strides = array<i32>} : memref<196x384xbf16, #tpu.memory_space<vmem>>, vector<4x384xbf16>,
    %14 = vector.extract_strided_slice %1 {offsets = [0, 6], sizes = [4, 384], strides = [1, 1]} : vector<4x640xbf16> to vector<4x384xbf16>
    %c24 = arith.constant 24 : index
    %c0_9 = arith.constant 0 : index
    %15 = vector.load %arg5[%c24, %c0_9] : memref<196x384xbf16, #tpu.memory_space<vmem>>, vector<4x384xbf16>
    tpu.vector_store %arg5[%c24, %c0_9], %14 {strides = array<i32>} : memref<196x384xbf16, #tpu.memory_space<vmem>>, vector<4x384xbf16>,
    %16 = vector.extract_strided_slice %1 {offsets = [0, 22], sizes = [4, 384], strides = [1, 1]} : vector<4x640xbf16> to vector<4x384xbf16>
    %c28 = arith.constant 28 : index
    %c0_10 = arith.constant 0 : index
    %17 = vector.load %arg5[%c28, %c0_10] : memref<196x384xbf16, #tpu.memory_space<vmem>>, vector<4x384xbf16>
    tpu.vector_store %arg5[%c28, %c0_10], %16 {strides = array<i32>} : memref<196x384xbf16, #tpu.memory_space<vmem>>, vector<4x384xbf16>,
    %18 = vector.extract_strided_slice %1 {offsets = [0, 23], sizes = [4, 384], strides = [1, 1]} : vector<4x640xbf16> to vector<4x384xbf16>
    %c32 = arith.constant 32 : index
    %c0_11 = arith.constant 0 : index
    %19 = vector.load %arg5[%c32, %c0_11] : memref<196x384xbf16, #tpu.memory_space<vmem>>, vector<4x384xbf16>
    tpu.vector_store %arg5[%c32, %c0_11], %18 {strides = array<i32>} : memref<196x384xbf16, #tpu.memory_space<vmem>>, vector<4x384xbf16>,
    %20 = vector.extract_strided_slice %1 {offsets = [0, 24], sizes = [4, 384], strides = [1, 1]} : vector<4x640xbf16> to vector<4x384xbf16>
    %c36 = arith.constant 36 : index
    %c0_12 = arith.constant 0 : index
    %21 = vector.load %arg5[%c36, %c0_12] : memref<196x384xbf16, #tpu.memory_space<vmem>>, vector<4x384xbf16>
    tpu.vector_store %arg5[%c36, %c0_12], %20 {strides = array<i32>} : memref<196x384xbf16, #tpu.memory_space<vmem>>, vector<4x384xbf16>,
    %22 = vector.extract_strided_slice %1 {offsets = [0, 25], sizes = [4, 384], strides = [1, 1]} : vector<4x640xbf16> to vector<4x384xbf16>
    %c40 = arith.constant 40 : index
    %c0_13 = arith.constant 0 : index
    %23 = vector.load %arg5[%c40, %c0_13] : memref<196x384xbf16, #tpu.memory_space<vmem>>, vector<4x384xbf16>
    tpu.vector_store %arg5[%c40, %c0_13], %22 {strides = array<i32>} : memref<196x384xbf16, #tpu.memory_space<vmem>>, vector<4x384xbf16>,
    %24 = vector.extract_strided_slice %1 {offsets = [0, 26], sizes = [4, 384], strides = [1, 1]} : vector<4x640xbf16> to vector<4x384xbf16>
    %c44 = arith.constant 44 : index
    %c0_14 = arith.constant 0 : index
    %25 = vector.load %arg5[%c44, %c0_14] : memref<196x384xbf16, #tpu.memory_space<vmem>>, vector<4x384xbf16>
    tpu.vector_store %arg5[%c44, %c0_14], %24 {strides = array<i32>} : memref<196x384xbf16, #tpu.memory_space<vmem>>, vector<4x384xbf16>,
    %26 = vector.extract_strided_slice %1 {offsets = [0, 27], sizes = [4, 384], strides = [1, 1]} : vector<4x640xbf16> to vector<4x384xbf16>
    %c48 = arith.constant 48 : index
    %c0_15 = arith.constant 0 : index
    %27 = vector.load %arg5[%c48, %c0_15] : memref<196x384xbf16, #tpu.memory_space<vmem>>, vector<4x384xbf16>
    tpu.vector_store %arg5[%c48, %c0_15], %26 {strides = array<i32>} : memref<196x384xbf16, #tpu.memory_space<vmem>>, vector<4x384xbf16>,
    %28 = vector.extract_strided_slice %1 {offsets = [0, 28], sizes = [4, 384], strides = [1, 1]} : vector<4x640xbf16> to vector<4x384xbf16>
    %c52 = arith.constant 52 : index
    %c0_16 = arith.constant 0 : index
    %29 = vector.load %arg5[%c52, %c0_16] : memref<196x384xbf16, #tpu.memory_space<vmem>>, vector<4x384xbf16>
    tpu.vector_store %arg5[%c52, %c0_16], %28 {strides = array<i32>} : memref<196x384xbf16, #tpu.memory_space<vmem>>, vector<4x384xbf16>,
    %30 = vector.extract_strided_slice %1 {offsets = [0, 44], sizes = [4, 384], strides = [1, 1]} : vector<4x640xbf16> to vector<4x384xbf16>
    %c56 = arith.constant 56 : index
    %c0_17 = arith.constant 0 : index
    %31 = vector.load %arg5[%c56, %c0_17] : memref<196x384xbf16, #tpu.memory_space<vmem>>, vector<4x384xbf16>
    tpu.vector_store %arg5[%c56, %c0_17], %30 {strides = array<i32>} : memref<196x384xbf16, #tpu.memory_space<vmem>>, vector<4x384xbf16>,
    %32 = vector.extract_strided_slice %1 {offsets = [0, 45], sizes = [4, 384], strides = [1, 1]} : vector<4x640xbf16> to vector<4x384xbf16>
    %c60 = arith.constant 60 : index
    %c0_18 = arith.constant 0 : index
    %33 = vector.load %arg5[%c60, %c0_18] : memref<196x384xbf16, #tpu.memory_space<vmem>>, vector<4x384xbf16>
    tpu.vector_store %arg5[%c60, %c0_18], %32 {strides = array<i32>} : memref<196x384xbf16, #tpu.memory_space<vmem>>, vector<4x384xbf16>,
    %34 = vector.extract_strided_slice %1 {offsets = [0, 46], sizes = [4, 384], strides = [1, 1]} : vector<4x640xbf16> to vector<4x384xbf16>
    %c64 = arith.constant 64 : index
    %c0_19 = arith.constant 0 : index
    %35 = vector.load %arg5[%c64, %c0_19] : memref<196x384xbf16, #tpu.memory_space<vmem>>, vector<4x384xbf16>
    tpu.vector_store %arg5[%c64, %c0_19], %34 {strides = array<i32>} : memref<196x384xbf16, #tpu.memory_space<vmem>>, vector<4x384xbf16>,
    %36 = vector.extract_strided_slice %1 {offsets = [0, 47], sizes = [4, 384], strides = [1, 1]} : vector<4x640xbf16> to vector<4x384xbf16>
    %c68 = arith.constant 68 : index
    %c0_20 = arith.constant 0 : index
    %37 = vector.load %arg5[%c68, %c0_20] : memref<196x384xbf16, #tpu.memory_space<vmem>>, vector<4x384xbf16>
    tpu.vector_store %arg5[%c68, %c0_20], %36 {strides = array<i32>} : memref<196x384xbf16, #tpu.memory_space<vmem>>, vector<4x384xbf16>,
    %38 = vector.extract_strided_slice %1 {offsets = [0, 48], sizes = [4, 384], strides = [1, 1]} : vector<4x640xbf16> to vector<4x384xbf16>
    %c72 = arith.constant 72 : index
    %c0_21 = arith.constant 0 : index
    %39 = vector.load %arg5[%c72, %c0_21] : memref<196x384xbf16, #tpu.memory_space<vmem>>, vector<4x384xbf16>
    tpu.vector_store %arg5[%c72, %c0_21], %38 {strides = array<i32>} : memref<196x384xbf16, #tpu.memory_space<vmem>>, vector<4x384xbf16>,
    %40 = vector.extract_strided_slice %1 {offsets = [0, 49], sizes = [4, 384], strides = [1, 1]} : vector<4x640xbf16> to vector<4x384xbf16>
    %c76 = arith.constant 76 : index
    %c0_22 = arith.constant 0 : index
    %41 = vector.load %arg5[%c76, %c0_22] : memref<196x384xbf16, #tpu.memory_space<vmem>>, vector<4x384xbf16>
    tpu.vector_store %arg5[%c76, %c0_22], %40 {strides = array<i32>} : memref<196x384xbf16, #tpu.memory_space<vmem>>, vector<4x384xbf16>,
    %42 = vector.extract_strided_slice %1 {offsets = [0, 50], sizes = [4, 384], strides = [1, 1]} : vector<4x640xbf16> to vector<4x384xbf16>
    %c80 = arith.constant 80 : index
    %c0_23 = arith.constant 0 : index
    %43 = vector.load %arg5[%c80, %c0_23] : memref<196x384xbf16, #tpu.memory_space<vmem>>, vector<4x384xbf16>
    tpu.vector_store %arg5[%c80, %c0_23], %42 {strides = array<i32>} : memref<196x384xbf16, #tpu.memory_space<vmem>>, vector<4x384xbf16>,
    %44 = vector.extract_strided_slice %1 {offsets = [0, 66], sizes = [4, 384], strides = [1, 1]} : vector<4x640xbf16> to vector<4x384xbf16>
    %c84 = arith.constant 84 : index
    %c0_24 = arith.constant 0 : index
    %45 = vector.load %arg5[%c84, %c0_24] : memref<196x384xbf16, #tpu.memory_space<vmem>>, vector<4x384xbf16>
    tpu.vector_store %arg5[%c84, %c0_24], %44 {strides = array<i32>} : memref<196x384xbf16, #tpu.memory_space<vmem>>, vector<4x384xbf16>,
    %46 = vector.extract_strided_slice %1 {offsets = [0, 67], sizes = [4, 384], strides = [1, 1]} : vector<4x640xbf16> to vector<4x384xbf16>
    %c88 = arith.constant 88 : index
    %c0_25 = arith.constant 0 : index
    %47 = vector.load %arg5[%c88, %c0_25] : memref<196x384xbf16, #tpu.memory_space<vmem>>, vector<4x384xbf16>
    tpu.vector_store %arg5[%c88, %c0_25], %46 {strides = array<i32>} : memref<196x384xbf16, #tpu.memory_space<vmem>>, vector<4x384xbf16>,
    %48 = vector.extract_strided_slice %1 {offsets = [0, 68], sizes = [4, 384], strides = [1, 1]} : vector<4x640xbf16> to vector<4x384xbf16>
    %c92 = arith.constant 92 : index
    %c0_26 = arith.constant 0 : index
    %49 = vector.load %arg5[%c92, %c0_26] : memref<196x384xbf16, #tpu.memory_space<vmem>>, vector<4x384xbf16>
    tpu.vector_store %arg5[%c92, %c0_26], %48 {strides = array<i32>} : memref<196x384xbf16, #tpu.memory_space<vmem>>, vector<4x384xbf16>,
    %50 = vector.extract_strided_slice %1 {offsets = [0, 69], sizes = [4, 384], strides = [1, 1]} : vector<4x640xbf16> to vector<4x384xbf16>
    %c96 = arith.constant 96 : index
    %c0_27 = arith.constant 0 : index
    %51 = vector.load %arg5[%c96, %c0_27] : memref<196x384xbf16, #tpu.memory_space<vmem>>, vector<4x384xbf16>
    tpu.vector_store %arg5[%c96, %c0_27], %50 {strides = array<i32>} : memref<196x384xbf16, #tpu.memory_space<vmem>>, vector<4x384xbf16>,
    %52 = vector.extract_strided_slice %1 {offsets = [0, 70], sizes = [4, 384], strides = [1, 1]} : vector<4x640xbf16> to vector<4x384xbf16>
    %c100 = arith.constant 100 : index
    %c0_28 = arith.constant 0 : index
    %53 = vector.load %arg5[%c100, %c0_28] : memref<196x384xbf16, #tpu.memory_space<vmem>>, vector<4x384xbf16>
    tpu.vector_store %arg5[%c100, %c0_28], %52 {strides = array<i32>} : memref<196x384xbf16, #tpu.memory_space<vmem>>, vector<4x384xbf16>,
    %54 = vector.extract_strided_slice %1 {offsets = [0, 71], sizes = [4, 384], strides = [1, 1]} : vector<4x640xbf16> to vector<4x384xbf16>
    %c104 = arith.constant 104 : index
    %c0_29 = arith.constant 0 : index
    %55 = vector.load %arg5[%c104, %c0_29] : memref<196x384xbf16, #tpu.memory_space<vmem>>, vector<4x384xbf16>
    tpu.vector_store %arg5[%c104, %c0_29], %54 {strides = array<i32>} : memref<196x384xbf16, #tpu.memory_space<vmem>>, vector<4x384xbf16>,
    %56 = vector.extract_strided_slice %1 {offsets = [0, 72], sizes = [4, 384], strides = [1, 1]} : vector<4x640xbf16> to vector<4x384xbf16>
    %c108 = arith.constant 108 : index
    %c0_30 = arith.constant 0 : index
    %57 = vector.load %arg5[%c108, %c0_30] : memref<196x384xbf16, #tpu.memory_space<vmem>>, vector<4x384xbf16>
    tpu.vector_store %arg5[%c108, %c0_30], %56 {strides = array<i32>} : memref<196x384xbf16, #tpu.memory_space<vmem>>, vector<4x384xbf16>,
    %58 = vector.extract_strided_slice %1 {offsets = [0, 88], sizes = [4, 384], strides = [1, 1]} : vector<4x640xbf16> to vector<4x384xbf16>
    %c112 = arith.constant 112 : index
    %c0_31 = arith.constant 0 : index
    %59 = vector.load %arg5[%c112, %c0_31] : memref<196x384xbf16, #tpu.memory_space<vmem>>, vector<4x384xbf16>
    tpu.vector_store %arg5[%c112, %c0_31], %58 {strides = array<i32>} : memref<196x384xbf16, #tpu.memory_space<vmem>>, vector<4x384xbf16>,
    %60 = vector.extract_strided_slice %1 {offsets = [0, 89], sizes = [4, 384], strides = [1, 1]} : vector<4x640xbf16> to vector<4x384xbf16>
    %c116 = arith.constant 116 : index
    %c0_32 = arith.constant 0 : index
    %61 = vector.load %arg5[%c116, %c0_32] : memref<196x384xbf16, #tpu.memory_space<vmem>>, vector<4x384xbf16>
    tpu.vector_store %arg5[%c116, %c0_32], %60 {strides = array<i32>} : memref<196x384xbf16, #tpu.memory_space<vmem>>, vector<4x384xbf16>,
    %62 = vector.extract_strided_slice %1 {offsets = [0, 90], sizes = [4, 384], strides = [1, 1]} : vector<4x640xbf16> to vector<4x384xbf16>
    %c120 = arith.constant 120 : index
    %c0_33 = arith.constant 0 : index
    %63 = vector.load %arg5[%c120, %c0_33] : memref<196x384xbf16, #tpu.memory_space<vmem>>, vector<4x384xbf16>
    tpu.vector_store %arg5[%c120, %c0_33], %62 {strides = array<i32>} : memref<196x384xbf16, #tpu.memory_space<vmem>>, vector<4x384xbf16>,
    %64 = vector.extract_strided_slice %1 {offsets = [0, 91], sizes = [4, 384], strides = [1, 1]} : vector<4x640xbf16> to vector<4x384xbf16>
    %c124 = arith.constant 124 : index
    %c0_34 = arith.constant 0 : index
    %65 = vector.load %arg5[%c124, %c0_34] : memref<196x384xbf16, #tpu.memory_space<vmem>>, vector<4x384xbf16>
    tpu.vector_store %arg5[%c124, %c0_34], %64 {strides = array<i32>} : memref<196x384xbf16, #tpu.memory_space<vmem>>, vector<4x384xbf16>,
    %66 = vector.extract_strided_slice %1 {offsets = [0, 92], sizes = [4, 384], strides = [1, 1]} : vector<4x640xbf16> to vector<4x384xbf16>
    %c128 = arith.constant 128 : index
    %c0_35 = arith.constant 0 : index
    %67 = vector.load %arg5[%c128, %c0_35] : memref<196x384xbf16, #tpu.memory_space<vmem>>, vector<4x384xbf16>
    tpu.vector_store %arg5[%c128, %c0_35], %66 {strides = array<i32>} : memref<196x384xbf16, #tpu.memory_space<vmem>>, vector<4x384xbf16>,
    %68 = vector.extract_strided_slice %1 {offsets = [0, 93], sizes = [4, 384], strides = [1, 1]} : vector<4x640xbf16> to vector<4x384xbf16>
    %c132 = arith.constant 132 : index
    %c0_36 = arith.constant 0 : index
    %69 = vector.load %arg5[%c132, %c0_36] : memref<196x384xbf16, #tpu.memory_space<vmem>>, vector<4x384xbf16>
    tpu.vector_store %arg5[%c132, %c0_36], %68 {strides = array<i32>} : memref<196x384xbf16, #tpu.memory_space<vmem>>, vector<4x384xbf16>,
    %70 = vector.extract_strided_slice %1 {offsets = [0, 94], sizes = [4, 384], strides = [1, 1]} : vector<4x640xbf16> to vector<4x384xbf16>
    %c136 = arith.constant 136 : index
    %c0_37 = arith.constant 0 : index
    %71 = vector.load %arg5[%c136, %c0_37] : memref<196x384xbf16, #tpu.memory_space<vmem>>, vector<4x384xbf16>
    tpu.vector_store %arg5[%c136, %c0_37], %70 {strides = array<i32>} : memref<196x384xbf16, #tpu.memory_space<vmem>>, vector<4x384xbf16>,
    %72 = vector.extract_strided_slice %1 {offsets = [0, 110], sizes = [4, 384], strides = [1, 1]} : vector<4x640xbf16> to vector<4x384xbf16>
    %c140 = arith.constant 140 : index
    %c0_38 = arith.constant 0 : index
    %73 = vector.load %arg5[%c140, %c0_38] : memref<196x384xbf16, #tpu.memory_space<vmem>>, vector<4x384xbf16>
    tpu.vector_store %arg5[%c140, %c0_38], %72 {strides = array<i32>} : memref<196x384xbf16, #tpu.memory_space<vmem>>, vector<4x384xbf16>,
    %74 = vector.extract_strided_slice %1 {offsets = [0, 111], sizes = [4, 384], strides = [1, 1]} : vector<4x640xbf16> to vector<4x384xbf16>
    %c144 = arith.constant 144 : index
    %c0_39 = arith.constant 0 : index
    %75 = vector.load %arg5[%c144, %c0_39] : memref<196x384xbf16, #tpu.memory_space<vmem>>, vector<4x384xbf16>
    tpu.vector_store %arg5[%c144, %c0_39], %74 {strides = array<i32>} : memref<196x384xbf16, #tpu.memory_space<vmem>>, vector<4x384xbf16>,
    %76 = vector.extract_strided_slice %1 {offsets = [0, 112], sizes = [4, 384], strides = [1, 1]} : vector<4x640xbf16> to vector<4x384xbf16>
    %c148 = arith.constant 148 : index
    %c0_40 = arith.constant 0 : index
    %77 = vector.load %arg5[%c148, %c0_40] : memref<196x384xbf16, #tpu.memory_space<vmem>>, vector<4x384xbf16>
    tpu.vector_store %arg5[%c148, %c0_40], %76 {strides = array<i32>} : memref<196x384xbf16, #tpu.memory_space<vmem>>, vector<4x384xbf16>,
    %78 = vector.extract_strided_slice %1 {offsets = [0, 113], sizes = [4, 384], strides = [1, 1]} : vector<4x640xbf16> to vector<4x384xbf16>
    %c152 = arith.constant 152 : index
    %c0_41 = arith.constant 0 : index
    %79 = vector.load %arg5[%c152, %c0_41] : memref<196x384xbf16, #tpu.memory_space<vmem>>, vector<4x384xbf16>
    tpu.vector_store %arg5[%c152, %c0_41], %78 {strides = array<i32>} : memref<196x384xbf16, #tpu.memory_space<vmem>>, vector<4x384xbf16>,
    %80 = vector.extract_strided_slice %1 {offsets = [0, 114], sizes = [4, 384], strides = [1, 1]} : vector<4x640xbf16> to vector<4x384xbf16>
    %c156 = arith.constant 156 : index
    %c0_42 = arith.constant 0 : index
    %81 = vector.load %arg5[%c156, %c0_42] : memref<196x384xbf16, #tpu.memory_space<vmem>>, vector<4x384xbf16>
    tpu.vector_store %arg5[%c156, %c0_42], %80 {strides = array<i32>} : memref<196x384xbf16, #tpu.memory_space<vmem>>, vector<4x384xbf16>,
    %82 = vector.extract_strided_slice %1 {offsets = [0, 115], sizes = [4, 384], strides = [1, 1]} : vector<4x640xbf16> to vector<4x384xbf16>
    %c160 = arith.constant 160 : index
    %c0_43 = arith.constant 0 : index
    %83 = vector.load %arg5[%c160, %c0_43] : memref<196x384xbf16, #tpu.memory_space<vmem>>, vector<4x384xbf16>
    tpu.vector_store %arg5[%c160, %c0_43], %82 {strides = array<i32>} : memref<196x384xbf16, #tpu.memory_space<vmem>>, vector<4x384xbf16>,
    %84 = vector.extract_strided_slice %1 {offsets = [0, 116], sizes = [4, 384], strides = [1, 1]} : vector<4x640xbf16> to vector<4x384xbf16>
    %c164 = arith.constant 164 : index
    %c0_44 = arith.constant 0 : index
    %85 = vector.load %arg5[%c164, %c0_44] : memref<196x384xbf16, #tpu.memory_space<vmem>>, vector<4x384xbf16>
    tpu.vector_store %arg5[%c164, %c0_44], %84 {strides = array<i32>} : memref<196x384xbf16, #tpu.memory_space<vmem>>, vector<4x384xbf16>,
    %86 = vector.extract_strided_slice %1 {offsets = [0, 132], sizes = [4, 384], strides = [1, 1]} : vector<4x640xbf16> to vector<4x384xbf16>
    %c168 = arith.constant 168 : index
    %c0_45 = arith.constant 0 : index
    %87 = vector.load %arg5[%c168, %c0_45] : memref<196x384xbf16, #tpu.memory_space<vmem>>, vector<4x384xbf16>
    tpu.vector_store %arg5[%c168, %c0_45], %86 {strides = array<i32>} : memref<196x384xbf16, #tpu.memory_space<vmem>>, vector<4x384xbf16>,
    %88 = vector.extract_strided_slice %1 {offsets = [0, 133], sizes = [4, 384], strides = [1, 1]} : vector<4x640xbf16> to vector<4x384xbf16>
    %c172 = arith.constant 172 : index
    %c0_46 = arith.constant 0 : index
    %89 = vector.load %arg5[%c172, %c0_46] : memref<196x384xbf16, #tpu.memory_space<vmem>>, vector<4x384xbf16>
    tpu.vector_store %arg5[%c172, %c0_46], %88 {strides = array<i32>} : memref<196x384xbf16, #tpu.memory_space<vmem>>, vector<4x384xbf16>,
    %90 = vector.extract_strided_slice %1 {offsets = [0, 134], sizes = [4, 384], strides = [1, 1]} : vector<4x640xbf16> to vector<4x384xbf16>
    %c176 = arith.constant 176 : index
    %c0_47 = arith.constant 0 : index
    %91 = vector.load %arg5[%c176, %c0_47] : memref<196x384xbf16, #tpu.memory_space<vmem>>, vector<4x384xbf16>
    tpu.vector_store %arg5[%c176, %c0_47], %90 {strides = array<i32>} : memref<196x384xbf16, #tpu.memory_space<vmem>>, vector<4x384xbf16>,
    %92 = vector.extract_strided_slice %1 {offsets = [0, 135], sizes = [4, 384], strides = [1, 1]} : vector<4x640xbf16> to vector<4x384xbf16>
    %c180 = arith.constant 180 : index
    %c0_48 = arith.constant 0 : index
    %93 = vector.load %arg5[%c180, %c0_48] : memref<196x384xbf16, #tpu.memory_space<vmem>>, vector<4x384xbf16>
    tpu.vector_store %arg5[%c180, %c0_48], %92 {strides = array<i32>} : memref<196x384xbf16, #tpu.memory_space<vmem>>, vector<4x384xbf16>,
    %94 = vector.extract_strided_slice %1 {offsets = [0, 136], sizes = [4, 384], strides = [1, 1]} : vector<4x640xbf16> to vector<4x384xbf16>
    %c184 = arith.constant 184 : index
    %c0_49 = arith.constant 0 : index
    %95 = vector.load %arg5[%c184, %c0_49] : memref<196x384xbf16, #tpu.memory_space<vmem>>, vector<4x384xbf16>
    tpu.vector_store %arg5[%c184, %c0_49], %94 {strides = array<i32>} : memref<196x384xbf16, #tpu.memory_space<vmem>>, vector<4x384xbf16>,
    %96 = vector.extract_strided_slice %1 {offsets = [0, 137], sizes = [4, 384], strides = [1, 1]} : vector<4x640xbf16> to vector<4x384xbf16>
    %c188 = arith.constant 188 : index
    %c0_50 = arith.constant 0 : index
    %97 = vector.load %arg5[%c188, %c0_50] : memref<196x384xbf16, #tpu.memory_space<vmem>>, vector<4x384xbf16>
    tpu.vector_store %arg5[%c188, %c0_50], %96 {strides = array<i32>} : memref<196x384xbf16, #tpu.memory_space<vmem>>, vector<4x384xbf16>,
    %98 = vector.extract_strided_slice %1 {offsets = [0, 138], sizes = [4, 384], strides = [1, 1]} : vector<4x640xbf16> to vector<4x384xbf16>
    %c192 = arith.constant 192 : index
    %c0_51 = arith.constant 0 : index
    %99 = vector.load %arg5[%c192, %c0_51] : memref<196x384xbf16, #tpu.memory_space<vmem>>, vector<4x384xbf16>
    tpu.vector_store %arg5[%c192, %c0_51], %98 {strides = array<i32>} : memref<196x384xbf16, #tpu.memory_space<vmem>>, vector<4x384xbf16>,
    %c0_52 = arith.constant 0 : index
    %c0_53 = arith.constant 0 : index
    %100 = vector.load %arg2[%c0_52, %c0_53] : memref<8x196xbf16, #tpu.memory_space<vmem>>, vector<8x196xbf16>
    %c0_54 = arith.constant 0 : index
    %c0_55 = arith.constant 0 : index
    %101 = vector.load %arg5[%c0_54, %c0_55] : memref<196x384xbf16, #tpu.memory_space<vmem>>, vector<196x384xbf16>
    %cst = arith.constant dense<0.000000e+00> : vector<8x384xf32>
    %102 = tpu.matmul %100, %101, %cst {dimension_numbers = #tpu.dot_dimension_numbers<[1], [0], [0], [1], [0, 0, 1, 1], [], []>} : vector<8x196xbf16>, vector<196x384xbf16>, vector<8x384xf32> -> vector<8x384xf32>
    %c0_56 = arith.constant 0 : index
    %c0_57 = arith.constant 0 : index
    %103 = vector.load %arg3[%c0_56, %c0_57] : memref<1x384xf32, #tpu.memory_space<vmem>>, vector<1x384xf32>
    %104 = vector.broadcast %103 : vector<1x384xf32> to vector<8x384xf32>
    %105 = arith.mulf %102, %104 : vector<8x384xf32>
    %cst_58 = arith.constant dense<0.000000e+00> : vector<8xf32>
    %106 = vector.multi_reduction <add>, %105, %cst_58 [1] : vector<8x384xf32> to vector<8xf32>
    %107 = vector.shape_cast %106 : vector<8xf32> to vector<8x1xf32>
    %cst_59 = arith.constant 3.906250e-03 : f32
    %108 = vector.broadcast %cst_59 : f32 to vector<8x1xf32>
    %109 = arith.mulf %107, %108 : vector<8x1xf32>
    %110 = arith.mulf %105, %105 : vector<8x384xf32>
    %cst_60 = arith.constant dense<0.000000e+00> : vector<8xf32>
    %111 = vector.multi_reduction <add>, %110, %cst_60 [1] : vector<8x384xf32> to vector<8xf32>
    %112 = vector.shape_cast %111 : vector<8xf32> to vector<8x1xf32>
    %cst_61 = arith.constant 3.906250e-03 : f32
    %113 = vector.broadcast %cst_61 : f32 to vector<8x1xf32>
    %114 = arith.mulf %112, %113 : vector<8x1xf32>
    %115 = arith.mulf %109, %109 : vector<8x1xf32>
    %116 = arith.subf %114, %115 : vector<8x1xf32>
    %117 = vector.broadcast %109 : vector<8x1xf32> to vector<8x384xf32>
    %118 = arith.subf %102, %117 : vector<8x384xf32>
    %cst_62 = arith.constant 9.99999974E-6 : f32
    %119 = vector.broadcast %cst_62 : f32 to vector<8x1xf32>
    %120 = arith.addf %116, %119 : vector<8x1xf32>
    %121 = math.rsqrt %120 : vector<8x1xf32>
    %122 = vector.broadcast %121 : vector<8x1xf32> to vector<8x384xf32>
    %123 = arith.mulf %118, %122 : vector<8x384xf32>
    %cst_63 = arith.constant 0.000000e+00 : f32
    %124 = vector.broadcast %cst_63 : f32 to vector<8x384xf32>
    %125 = arith.maximumf %123, %124 : vector<8x384xf32>
    %c0_64 = arith.constant 0 : index
    %c0_65 = arith.constant 0 : index
    %c0_66 = arith.constant 0 : index
    %126 = vector.load %arg4[%c0_64, %c0_65, %c0_66] : memref<1x8x384xf32, #tpu.memory_space<vmem>>, vector<1x8x384xf32>
    %127 = vector.shape_cast %126 : vector<1x8x384xf32> to vector<8x384xf32>
    %128 = vector.shape_cast %125 : vector<8x384xf32> to vector<1x8x384xf32>
    tpu.vector_store %arg4[%c0_64, %c0_65, %c0_66], %128 {strides = array<i32>} : memref<1x8x384xf32, #tpu.memory_space<vmem>>, vector<1x8x384xf32>,
    return
  }
  func.func @transform_0(%arg0: i32) -> (i32, i32, i32) {
    %c0_i32 = arith.constant 0 : i32
    %c0_i32_0 = arith.constant 0 : i32
    %c0_i32_1 = arith.constant 0 : i32
    return %arg0, %c0_i32, %c0_i32_0 : i32, i32, i32
  }
  func.func @transform_1(%arg0: i32) -> (i32, i32) {
    %c0_i32 = arith.constant 0 : i32
    %c0_i32_0 = arith.constant 0 : i32
    %c0_i32_1 = arith.constant 0 : i32
    return %c0_i32, %c0_i32_0 : i32, i32
  }
  func.func @transform_2(%arg0: i32) -> (i32, i32) {
    %c0_i32 = arith.constant 0 : i32
    %c0_i32_0 = arith.constant 0 : i32
    %c0_i32_1 = arith.constant 0 : i32
    return %c0_i32, %c0_i32_0 : i32, i32
  }
  func.func @transform_3(%arg0: i32) -> (i32, i32, i32) {
    %c0_i32 = arith.constant 0 : i32
    %c0_i32_0 = arith.constant 0 : i32
    %c0_i32_1 = arith.constant 0 : i32
    return %arg0, %c0_i32, %c0_i32_0 : i32, i32, i32
  }
}

</mosaic_0001>

<llo_original>
// kernel: tpu_custom_call.1
$region0: #{tpu_custom_call.1}
  #allocation0 [shape = 'u32[]', space=smem, size = 0x4, offset = 0x4, fixed_abs, tag = 'smem constant byte address 0x4 - core index']
  #allocation1 [shape = 'u32[144,128]{1,0:T(1,128)}', space=vmem, size = 0x12000, scoped, tag = 'internal scratch']
  #allocation2 [shape = 'bf16[196,384]{1,0:T(8,128)(2,1)}', space=vmem, size = 0x25800, scoped, tag = 'scratch operand']
  %s0 = inlined_call_operand.hbm [shape: bf16[2,4,640], index: 0, kind: input, shape index: {}]
  %s1 = inlined_call_operand.hbm [shape: bf16[8,196], index: 1, kind: input, shape index: {}]
  %s2 = inlined_call_operand.vmem [shape: f32[1,384], index: 2, kind: input, shape index: {}]
  %s3 = inlined_call_operand.hbm [shape: f32[2,8,384], index: 3, kind: output, shape index: {}]
  %s4 = sld [smem:[#allocation0]]
  $region53: #{tpu_custom_call.1} parent=0
    _
  %s6 = ssub.s32 1, %s4
  %s7 = scalar_select 0, %s6, %s4
  $region1: #{tpu_custom_call.1} parent=0
    #allocation3 [shape = 'u8[10240]{0}', space=vmem, size = 0x2800, scoped, tag = 'input window, operand 0']
    #allocation4 [shape = 's32[2]{0}', space=sflag, size = 0x8, scoped, tag = 'scoped memory for tpu_custom_call.1']
    #allocation5 [shape = 's32[2]{0}', space=sflag, size = 0x8, scoped, tag = 'scoped memory for tpu_custom_call.1']
    #allocation6 [shape = 'u8[4096]{0}', space=vmem, size = 0x1000, scoped, tag = 'input window, operand 1, single buffered']
    #allocation7 [shape = 's32[1]{0}', space=sflag, size = 0x4, scoped, tag = 'scoped memory for tpu_custom_call.1']
    #allocation8 [shape = 'u8[24576]{0}', space=vmem, size = 0x6000, scoped, tag = 'output window, operand 0']
    %8 = vsyncpa [#allocation4], 0
    %s9 = scalar_lea.sflag [#allocation4], 1
    %10 = vsyncpa %s9, 0
    %11 = vsyncpa [#allocation7], 0
    %12 = vsyncpa [#allocation5], 0
    %s13 = scalar_lea.sflag [#allocation5], 1
    %14 = vsyncpa %s13, 0
    loop: start=0, step=1, limit=4
    $region2: #{tpu_custom_call.1} parent=1 // loop_pre_header
      _
    $region3: #{tpu_custom_call.1} parent=1 // loop_header
      %s16 = sphi 0, %s20
      %p17 = scmp.ge.s32.totalorder %s16, 4
      %s26 = sphi 0, %s28
      %s29 = sphi 0, %s26
      %s30 = sphi 0, %s29
      %s46 = sphi 0, %s30
      %s50 = sphi 0, %s50
      %s52 = sphi 0, %s50
      %s53 = sphi 0, %s52
      %s67 = sphi 0, %s53
      %s71 = sphi 0, %s71
      %s73 = sphi 0, %s71
      %s74 = sphi 0, %s73
      %s88 = sphi 0, %s74
      %s94 = sphi 0, %s96
      %s97 = sphi 0, %s94
      %s98 = sphi 0, %s97
      %s114 = sphi 0, %s98
    $region4: #{tpu_custom_call.1} parent=1 // loop_header_branch
      %19 = sbr.rel (%p17) target = $region8
    $region5: #{tpu_custom_call.1} parent=1 // loop_body
      %s21 = ssub.s32 %s16, 1
      %s22 = ssub.s32 %s16, 2
      %s23 = sadd.s32 %s16, 1
      %s24 = ssub.s32 %s16, %s23
      %p25 = scmp.eq.s32.totalorder %s24, 0
      %s27 = sadd.s32 %s26, 1
      %s28 = scalar_select %p25, %s26, %s27
      %p31 = pneg %p25
      %p32 = scmp.eq.s32.totalorder %s16, 1
      %p33 = por %p31, %p32
      %p34 = scmp.ne.s32.totalorder %s26, %s29
      %p35 = scmp.eq.s32.totalorder %s16, 0
      %p36 = por %p34, %p35
      %p37 = scmp.ne.s32.totalorder %s26, %s29
      %p38 = scmp.eq.s32.totalorder %s21, 1
      %p39 = por %p37, %p38
      %p40 = scmp.ne.s32.totalorder %s29, %s30
      %p41 = scmp.eq.s32.totalorder %s21, 0
      %p42 = por %p40, %p41
      %p43 = scmp.ne.s32.totalorder %s29, %s30
      %p44 = scmp.eq.s32.totalorder %s22, 1
      %p45 = por %p43, %p44
      %p47 = scmp.ne.s32.totalorder %s30, %s46
      %p48 = scmp.eq.s32.totalorder %s22, 0
      %p49 = por %p47, %p48
      %s51 = sadd.s32 %s50, 1
      %p54 = scmp.eq.s32.totalorder %s16, 1
      %p55 = scmp.ne.s32.totalorder %s50, %s52
      %p56 = scmp.eq.s32.totalorder %s16, 0
      %p57 = por %p55, %p56
      %p58 = scmp.ne.s32.totalorder %s50, %s52
      %p59 = scmp.eq.s32.totalorder %s21, 1
      %p60 = por %p58, %p59
      %p61 = scmp.ne.s32.totalorder %s52, %s53
      %p62 = scmp.eq.s32.totalorder %s21, 0
      %p63 = por %p61, %p62
      %p64 = scmp.ne.s32.totalorder %s52, %s53
      %p65 = scmp.eq.s32.totalorder %s22, 1
      %p66 = por %p64, %p65
      %p68 = scmp.ne.s32.totalorder %s53, %s67
      %p69 = scmp.eq.s32.totalorder %s22, 0
      %p70 = por %p68, %p69
      %s72 = sadd.s32 %s71, 1
      %p75 = scmp.eq.s32.totalorder %s16, 1
      %p76 = scmp.ne.s32.totalorder %s71, %s73
      %p77 = scmp.eq.s32.totalorder %s16, 0
      %p78 = por %p76, %p77
      %p79 = scmp.ne.s32.totalorder %s71, %s73
      %p80 = scmp.eq.s32.totalorder %s21, 1
      %p81 = por %p79, %p80
      %p82 = scmp.ne.s32.totalorder %s73, %s74
      %p83 = scmp.eq.s32.totalorder %s21, 0
      %p84 = por %p82, %p83
      %p85 = scmp.ne.s32.totalorder %s73, %s74
      %p86 = scmp.eq.s32.totalorder %s22, 1
      %p87 = por %p85, %p86
      %p89 = scmp.ne.s32.totalorder %s74, %s88
      %p90 = scmp.eq.s32.totalorder %s22, 0
      %p91 = por %p89, %p90
      %s92 = ssub.s32 %s16, %s23
      %p93 = scmp.eq.s32.totalorder %s92, 0
      %s95 = sadd.s32 %s94, 1
      %s96 = scalar_select %p93, %s94, %s95
      %p99 = pneg %p93
      %p100 = scmp.eq.s32.totalorder %s16, 1
      %p101 = por %p99, %p100
      %p102 = scmp.ne.s32.totalorder %s94, %s97
      %p103 = scmp.eq.s32.totalorder %s16, 0
      %p104 = por %p102, %p103
      %p105 = scmp.ne.s32.totalorder %s94, %s97
      %p106 = scmp.eq.s32.totalorder %s21, 1
      %p107 = por %p105, %p106
      %p108 = scmp.ne.s32.totalorder %s97, %s98
      %p109 = scmp.eq.s32.totalorder %s21, 0
      %p110 = por %p108, %p109
      %p111 = scmp.ne.s32.totalorder %s97, %s98
      %p112 = scmp.eq.s32.totalorder %s22, 1
      %p113 = por %p111, %p112
      %p115 = scmp.ne.s32.totalorder %s98, %s114
      %p116 = scmp.eq.s32.totalorder %s22, 0
      %p117 = por %p115, %p116
      %p118 = scmp.le.s32.totalorder 1, %s16
      %p119 = scmp.lt.s32.totalorder %s16, 3
      %p120 = pnand %p118, %p119
      %p121 = pneg %p120
      // Predicated region
      $region9: #{tpu_custom_call.1} parent=5 // pred_check
        _
      $region10: #{tpu_custom_call.1} parent=5 // pred_check_branch
        %123 = sbr.rel (%p120) target = $region12
      $region11: #{tpu_custom_call.1} parent=5 // pred_region
        %s124 = ssub.s32 %s16, 1
        // Predicated region
        $region13: #{tpu_custom_call.1} parent=11 // pred_check
          %p125 = pneg %p63
        $region14: #{tpu_custom_call.1} parent=11 // pred_check_branch
          %127 = sbr.rel (%p125) target = $region16
        $region15: #{tpu_custom_call.1} parent=11 // pred_region
          %s129 = ssub.s32 128, 128
          %130 = vsyncadd [#allocation7], %s129
          %s132 = sshll.u32 [#allocation6], 4
          %s133 = int_to_ptr.vmem [resolvable:$true] %s132
          %135 = dma.hbm_to_vmem [thread:$0]  %s1, 128, %s133, [#allocation7]
        $region16: #{tpu_custom_call.1} parent=11 // pred_fallthru
          _
        // Predicated region
        $region17: #{tpu_custom_call.1} parent=11 // pred_check
          %p136 = pneg %p84
        $region18: #{tpu_custom_call.1} parent=11 // pred_check_branch
          %138 = sbr.rel (%p136) target = $region20
        $region19: #{tpu_custom_call.1} parent=11 // pred_region
          _
        $region20: #{tpu_custom_call.1} parent=11 // pred_fallthru
          _
      $region12: #{tpu_custom_call.1} parent=5 // pred_fallthru
        _
      %p139 = scmp.lt.s32.totalorder %s16, 2
      // Predicated region
      $region21: #{tpu_custom_call.1} parent=5 // pred_check
        %p140 = pneg %p139
      $region22: #{tpu_custom_call.1} parent=5 // pred_check_branch
        %142 = sbr.rel (%p140) target = $region24
      $region23: #{tpu_custom_call.1} parent=5 // pred_region
        // Predicated region
        $region25: #{tpu_custom_call.1} parent=23 // pred_check
          %p143 = pneg %p36
        $region26: #{tpu_custom_call.1} parent=23 // pred_check_branch
          %145 = sbr.rel (%p143) target = $region28
        $region27: #{tpu_custom_call.1} parent=23 // pred_region
          %s146 = sand.u32 %s26, 1
          %s147 = scalar_lea.sflag [#allocation4], %s146
          %s148 = sand.u32 %s26, 1
          %s149 = smul.addr %s148, 10
          %s150 = scalar_lea.vmem [#allocation3], %s149
          %s152 = ssub.s32 160, 160
          %153 = vsyncadd %s147, %s152
          %s154 = smul.addr %s16, 5
          %s155 = smul.addr %s154, 32
          %s156 = scalar_lea.hbm %s0, %s155
          %s158 = sshll.u32 %s150, 4
          %s159 = int_to_ptr.vmem [resolvable:$true] %s158
          %161 = dma.hbm_to_vmem [thread:$0]  %s156, 160, %s159, %s147
        $region28: #{tpu_custom_call.1} parent=23 // pred_fallthru
          _
      $region24: #{tpu_custom_call.1} parent=5 // pred_fallthru
        _
      %p162 = scmp.le.s32.totalorder 1, %s16
      %p163 = scmp.lt.s32.totalorder %s16, 3
      %p164 = pnand %p162, %p163
      %p165 = pneg %p164
      // Predicated region
      $region29: #{tpu_custom_call.1} parent=5 // pred_check
        _
      $region30: #{tpu_custom_call.1} parent=5 // pred_check_branch
        %167 = sbr.rel (%p164) target = $region32
      $region31: #{tpu_custom_call.1} parent=5 // pred_region
        %s168 = ssub.s32 %s16, 1
        %s169 = sand.u32 %s29, 1
        %s170 = scalar_lea.sflag [#allocation4], %s169
        %s171 = sand.u32 %s29, 1
        %s172 = smul.addr %s171, 10
        %s173 = scalar_lea.vmem [#allocation3], %s172
        // Predicated region
        $region33: #{tpu_custom_call.1} parent=31 // pred_check
          %p174 = pneg %p42
        $region34: #{tpu_custom_call.1} parent=31 // pred_check_branch
          %176 = sbr.rel (%p174) target = $region36
        $region35: #{tpu_custom_call.1} parent=31 // pred_region
          %177 = dma.done %s170, 160
        $region36: #{tpu_custom_call.1} parent=31 // pred_fallthru
          _
        // Predicated region
        $region37: #{tpu_custom_call.1} parent=31 // pred_check
          %p178 = pneg %p63
        $region38: #{tpu_custom_call.1} parent=31 // pred_check_branch
          %180 = sbr.rel (%p178) target = $region40
        $region39: #{tpu_custom_call.1} parent=31 // pred_region
          %181 = dma.done [#allocation7], 128
        $region40: #{tpu_custom_call.1} parent=31 // pred_fallthru
          _
        %s182 = sand.u32 %s29, 1
        %s183 = scalar_lea.sflag [#allocation4], %s182
        %s184 = sand.u32 %s29, 1
        %s185 = smul.addr %s184, 10
        %s186 = scalar_lea.vmem [#allocation3], %s185
        %p187 = pneg %p42
        %p188 = pneg %p39
        %p189 = pneg %p63
        %p190 = pneg %p60
        %p191 = pneg %p84
        %p192 = pneg %p81
        %p193 = pneg %p110
        %p194 = pneg %p107
        %s195 = sand.u32 %s97, 1
        %s196 = scalar_lea.sflag [#allocation5], %s195
        %s197 = sand.u32 %s97, 1
        %s198 = smul.addr %s197, 24
        %s199 = scalar_lea.vmem [#allocation8], %s198
        %v201 = vld [vmem:[%s173] sm:$0xff]
        %v202 = vld [vmem:[%s173 + $0x8] sm:$0x3]
        %v204 = vcombine.high %v201, %v201
        %v206 = vunpack.c.l.s4 1983009808
        %v207 = vunpack.c.0.s8 %v206
        %v208 = vlaneseq
        %v209 = vshrl.u32 %v208, 7
        %v210 = vsub.s32 %v207, %v209
        %v211 = vrot.slane %v201, %v210
        %v213 = vunpack.c.l.s4 1983009808
        %v214 = vunpack.c.0.s8 %v213
        %v215 = vlaneseq
        %v216 = vshrl.u32 %v215, 7
        %v217 = vsub.s32 %v214, %v216
        %v218 = vrot.slane %v204, %v217
        %221 = vst [vmem:[#allocation2] sm:$0x33] %v211
        %222 = vst [vmem:[#allocation2 + $0x8] sm:$0x3] %v218
        %v223 = vcombine.low %v201, %v201
        %v225 = vunpack.c.l.s4 1983009808
        %v226 = vunpack.c.0.s8 %v225
        %v227 = vlaneseq
        %v228 = vshrl.u32 %v227, 7
        %v229 = vsub.s32 %v226, %v228
        %v230 = vrot.slane %v223, %v229
        %231 = vrot.lane.b32.xlu0 %v230, 127
        %v232 = vpop.permute.xlu0 %231
        %233 = vrot.lane.b32.xlu0 %v211, 127
        %v234 = vpop.permute.xlu0 %233
        %v235 = vrot.slane %v232, 4
        %v236 = vrot.slane %v234, 4
        %vm237 = vcmask 1043456
        %v238 = vsel %vm237, %v235, %v236
        %vm239 = vcmask 1039360
        %v240 = vsel %vm239, %v232, %v238
        %v241 = vsel %vm239, %v234, %v236
        %244 = vst [vmem:[#allocation2] sm:$0xcc] %v240
        %245 = vst [vmem:[#allocation2 + $0x8] sm:$0xc] %v241
        %246 = vrot.lane.b32.xlu0 %v211, 126
        %v247 = vpop.permute.xlu0 %246
        %248 = vrot.lane.b32.xlu0 %v218, 126
        %v249 = vpop.permute.xlu0 %248
        %v250 = vrot.slane %v247, 4
        %v251 = vrot.slane %v249, 4
        %v252 = vsel %vm237, %v250, %v251
        %vm253 = vcmask 1031168
        %v254 = vsel %vm253, %v247, %v252
        %v255 = vsel %vm253, %v249, %v251
        %258 = vst [vmem:[#allocation2 + $0xc] sm:$0x33] %v254
        %259 = vst [vmem:[#allocation2 + $0x14] sm:$0x3] %v255
        %260 = vrot.lane.b32.xlu0 %v230, 125
        %v261 = vpop.permute.xlu0 %260
        %262 = vrot.lane.b32.xlu0 %v211, 125
        %v263 = vpop.permute.xlu0 %262
        %v264 = vrot.slane %v261, 4
        %v265 = vrot.slane %v263, 4
        %v266 = vsel %vm237, %v264, %v265
        %vm267 = vcmask 1022976
        %v268 = vsel %vm267, %v261, %v266
        %v269 = vsel %vm267, %v263, %v265
        %272 = vst [vmem:[#allocation2 + $0xc] sm:$0xcc] %v268
        %273 = vst [vmem:[#allocation2 + $0x14] sm:$0xc] %v269
        %274 = vrot.lane.b32.xlu0 %v211, 124
        %v275 = vpop.permute.xlu0 %274
        %276 = vrot.lane.b32.xlu0 %v218, 124
        %v277 = vpop.permute.xlu0 %276
        %v278 = vrot.slane %v275, 4
        %v279 = vrot.slane %v277, 4
        %v280 = vsel %vm237, %v278, %v279
        %vm281 = vcmask 1014784
        %v282 = vsel %vm281, %v275, %v280
        %v283 = vsel %vm281, %v277, %v279
        %286 = vst [vmem:[#allocation2 + $0x18] sm:$0x33] %v282
        %287 = vst [vmem:[#allocation2 + $0x20] sm:$0x3] %v283
        %288 = vrot.lane.b32.xlu0 %v230, 123
        %v289 = vpop.permute.xlu0 %288
        %290 = vrot.lane.b32.xlu0 %v211, 123
        %v291 = vpop.permute.xlu0 %290
        %v292 = vrot.slane %v289, 4
        %v293 = vrot.slane %v291, 4
        %v294 = vsel %vm237, %v292, %v293
        %vm295 = vcmask 1006592
        %v296 = vsel %vm295, %v289, %v294
        %v297 = vsel %vm295, %v291, %v293
        %300 = vst [vmem:[#allocation2 + $0x18] sm:$0xcc] %v296
        %301 = vst [vmem:[#allocation2 + $0x20] sm:$0xc] %v297
        %302 = vrot.lane.b32.xlu0 %v211, 122
        %v303 = vpop.permute.xlu0 %302
        %304 = vrot.lane.b32.xlu0 %v218, 122
        %v305 = vpop.permute.xlu0 %304
        %v306 = vrot.slane %v303, 4
        %v307 = vrot.slane %v305, 4
        %v308 = vsel %vm237, %v306, %v307
        %vm309 = vcmask 998400
        %v310 = vsel %vm309, %v303, %v308
        %v311 = vsel %vm309, %v305, %v307
        %314 = vst [vmem:[#allocation2 + $0x24] sm:$0x33] %v310
        %315 = vst [vmem:[#allocation2 + $0x2c] sm:$0x3] %v311
        %316 = vrot.lane.b32.xlu0 %v230, 106
        %v317 = vpop.permute.xlu0 %316
        %318 = vrot.lane.b32.xlu0 %v211, 106
        %v319 = vpop.permute.xlu0 %318
        %v320 = vrot.slane %v317, 4
        %v321 = vrot.slane %v319, 4
        %v322 = vsel %vm237, %v320, %v321
        %vm323 = vcmask 867328
        %v324 = vsel %vm323, %v317, %v322
        %v325 = vsel %vm323, %v319, %v321
        %328 = vst [vmem:[#allocation2 + $0x24] sm:$0xcc] %v324
        %329 = vst [vmem:[#allocation2 + $0x2c] sm:$0xc] %v325
        %330 = vrot.lane.b32.xlu0 %v211, 105
        %v331 = vpop.permute.xlu0 %330
        %332 = vrot.lane.b32.xlu0 %v218, 105
        %v333 = vpop.permute.xlu0 %332
        %v334 = vrot.slane %v331, 4
        %v335 = vrot.slane %v333, 4
        %v336 = vsel %vm237, %v334, %v335
        %vm337 = vcmask 859136
        %v338 = vsel %vm337, %v331, %v336
        %v339 = vsel %vm337, %v333, %v335
        %342 = vst [vmem:[#allocation2 + $0x30] sm:$0x33] %v338
        %343 = vst [vmem:[#allocation2 + $0x38] sm:$0x3] %v339
        %344 = vrot.lane.b32.xlu0 %v230, 104
        %v345 = vpop.permute.xlu0 %344
        %346 = vrot.lane.b32.xlu0 %v211, 104
        %v347 = vpop.permute.xlu0 %346
        %v348 = vrot.slane %v345, 4
        %v349 = vrot.slane %v347, 4
        %v350 = vsel %vm237, %v348, %v349
        %vm351 = vcmask 850944
        %v352 = vsel %vm351, %v345, %v350
        %v353 = vsel %vm351, %v347, %v349
        %356 = vst [vmem:[#allocation2 + $0x30] sm:$0xcc] %v352
        %357 = vst [vmem:[#allocation2 + $0x38] sm:$0xc] %v353
        %358 = vrot.lane.b32.xlu0 %v211, 103
        %v359 = vpop.permute.xlu0 %358
        %360 = vrot.lane.b32.xlu0 %v218, 103
        %v361 = vpop.permute.xlu0 %360
        %v362 = vrot.slane %v359, 4
        %v363 = vrot.slane %v361, 4
        %v364 = vsel %vm237, %v362, %v363
        %vm365 = vcmask 842752
        %v366 = vsel %vm365, %v359, %v364
        %v367 = vsel %vm365, %v361, %v363
        %370 = vst [vmem:[#allocation2 + $0x3c] sm:$0x33] %v366
        %371 = vst [vmem:[#allocation2 + $0x44] sm:$0x3] %v367
        %372 = vrot.lane.b32.xlu0 %v230, 102
        %v373 = vpop.permute.xlu0 %372
        %374 = vrot.lane.b32.xlu0 %v211, 102
        %v375 = vpop.permute.xlu0 %374
        %v376 = vrot.slane %v373, 4
        %v377 = vrot.slane %v375, 4
        %v378 = vsel %vm237, %v376, %v377
        %vm379 = vcmask 834560
        %v380 = vsel %vm379, %v373, %v378
        %v381 = vsel %vm379, %v375, %v377
        %384 = vst [vmem:[#allocation2 + $0x3c] sm:$0xcc] %v380
        %385 = vst [vmem:[#allocation2 + $0x44] sm:$0xc] %v381
        %386 = vrot.lane.b32.xlu0 %v211, 101
        %v387 = vpop.permute.xlu0 %386
        %388 = vrot.lane.b32.xlu0 %v218, 101
        %v389 = vpop.permute.xlu0 %388
        %v390 = vrot.slane %v387, 4
        %v391 = vrot.slane %v389, 4
        %v392 = vsel %vm237, %v390, %v391
        %vm393 = vcmask 826368
        %v394 = vsel %vm393, %v387, %v392
        %v395 = vsel %vm393, %v389, %v391
        %398 = vst [vmem:[#allocation2 + $0x48] sm:$0x33] %v394
        %399 = vst [vmem:[#allocation2 + $0x50] sm:$0x3] %v395
        %400 = vrot.lane.b32.xlu0 %v230, 100
        %v401 = vpop.permute.xlu0 %400
        %402 = vrot.lane.b32.xlu0 %v211, 100
        %v403 = vpop.permute.xlu0 %402
        %v404 = vrot.slane %v401, 4
        %v405 = vrot.slane %v403, 4
        %v406 = vsel %vm237, %v404, %v405
        %vm407 = vcmask 818176
        %v408 = vsel %vm407, %v401, %v406
        %v409 = vsel %vm407, %v403, %v405
        %412 = vst [vmem:[#allocation2 + $0x48] sm:$0xcc] %v408
        %413 = vst [vmem:[#allocation2 + $0x50] sm:$0xc] %v409
        %414 = vrot.lane.b32.xlu0 %v211, 84
        %v415 = vpop.permute.xlu0 %414
        %416 = vrot.lane.b32.xlu0 %v218, 84
        %v417 = vpop.permute.xlu0 %416
        %v418 = vrot.slane %v415, 4
        %v419 = vrot.slane %v417, 4
        %v420 = vsel %vm237, %v418, %v419
        %vm421 = vcmask 687104
        %v422 = vsel %vm421, %v415, %v420
        %v423 = vsel %vm421, %v417, %v419
        %426 = vst [vmem:[#allocation2 + $0x54] sm:$0x33] %v422
        %427 = vst [vmem:[#allocation2 + $0x5c] sm:$0x3] %v423
        %428 = vrot.lane.b32.xlu0 %v230, 83
        %v429 = vpop.permute.xlu0 %428
        %430 = vrot.lane.b32.xlu0 %v211, 83
        %v431 = vpop.permute.xlu0 %430
        %v432 = vrot.slane %v429, 4
        %v433 = vrot.slane %v431, 4
        %v434 = vsel %vm237, %v432, %v433
        %vm435 = vcmask 678912
        %v436 = vsel %vm435, %v429, %v434
        %v437 = vsel %vm435, %v431, %v433
        %440 = vst [vmem:[#allocation2 + $0x54] sm:$0xcc] %v436
        %441 = vst [vmem:[#allocation2 + $0x5c] sm:$0xc] %v437
        %442 = vrot.lane.b32.xlu0 %v211, 82
        %v443 = vpop.permute.xlu0 %442
        %444 = vrot.lane.b32.xlu0 %v218, 82
        %v445 = vpop.permute.xlu0 %444
        %v446 = vrot.slane %v443, 4
        %v447 = vrot.slane %v445, 4
        %v448 = vsel %vm237, %v446, %v447
        %vm449 = vcmask 670720
        %v450 = vsel %vm449, %v443, %v448
        %v451 = vsel %vm449, %v445, %v447
        %454 = vst [vmem:[#allocation2 + $0x60] sm:$0x33] %v450
        %455 = vst [vmem:[#allocation2 + $0x68] sm:$0x3] %v451
        %456 = vrot.lane.b32.xlu0 %v230, 81
        %v457 = vpop.permute.xlu0 %456
        %458 = vrot.lane.b32.xlu0 %v211, 81
        %v459 = vpop.permute.xlu0 %458
        %v460 = vrot.slane %v457, 4
        %v461 = vrot.slane %v459, 4
        %v462 = vsel %vm237, %v460, %v461
        %vm463 = vcmask 662528
        %v464 = vsel %vm463, %v457, %v462
        %v465 = vsel %vm463, %v459, %v461
        %468 = vst [vmem:[#allocation2 + $0x60] sm:$0xcc] %v464
        %469 = vst [vmem:[#allocation2 + $0x68] sm:$0xc] %v465
        %470 = vrot.lane.b32.xlu0 %v211, 80
        %v471 = vpop.permute.xlu0 %470
        %472 = vrot.lane.b32.xlu0 %v218, 80
        %v473 = vpop.permute.xlu0 %472
        %v474 = vrot.slane %v471, 4
        %v475 = vrot.slane %v473, 4
        %v476 = vsel %vm237, %v474, %v475
        %vm477 = vcmask 654336
        %v478 = vsel %vm477, %v471, %v476
        %v479 = vsel %vm477, %v473, %v475
        %482 = vst [vmem:[#allocation2 + $0x6c] sm:$0x33] %v478
        %483 = vst [vmem:[#allocation2 + $0x74] sm:$0x3] %v479
        %484 = vrot.lane.b32.xlu0 %v230, 79
        %v485 = vpop.permute.xlu0 %484
        %486 = vrot.lane.b32.xlu0 %v211, 79
        %v487 = vpop.permute.xlu0 %486
        %v488 = vrot.slane %v485, 4
        %v489 = vrot.slane %v487, 4
        %v490 = vsel %vm237, %v488, %v489
        %vm491 = vcmask 646144
        %v492 = vsel %vm491, %v485, %v490
        %v493 = vsel %vm491, %v487, %v489
        %496 = vst [vmem:[#allocation2 + $0x6c] sm:$0xcc] %v492
        %497 = vst [vmem:[#allocation2 + $0x74] sm:$0xc] %v493
        %498 = vrot.lane.b32.xlu0 %v211, 78
        %v499 = vpop.permute.xlu0 %498
        %500 = vrot.lane.b32.xlu0 %v218, 78
        %v501 = vpop.permute.xlu0 %500
        %v502 = vrot.slane %v499, 4
        %v503 = vrot.slane %v501, 4
        %v504 = vsel %vm237, %v502, %v503
        %vm505 = vcmask 637952
        %v506 = vsel %vm505, %v499, %v504
        %v507 = vsel %vm505, %v501, %v503
        %510 = vst [vmem:[#allocation2 + $0x78] sm:$0x33] %v506
        %511 = vst [vmem:[#allocation2 + $0x80] sm:$0x3] %v507
        %512 = vrot.lane.b32.xlu0 %v230, 62
        %v513 = vpop.permute.xlu0 %512
        %514 = vrot.lane.b32.xlu0 %v211, 62
        %v515 = vpop.permute.xlu0 %514
        %v516 = vrot.slane %v513, 4
        %v517 = vrot.slane %v515, 4
        %v518 = vsel %vm237, %v516, %v517
        %vm519 = vcmask 506880
        %v520 = vsel %vm519, %v513, %v518
        %v521 = vsel %vm519, %v515, %v517
        %524 = vst [vmem:[#allocation2 + $0x78] sm:$0xcc] %v520
        %525 = vst [vmem:[#allocation2 + $0x80] sm:$0xc] %v521
        %526 = vrot.lane.b32.xlu0 %v211, 61
        %v527 = vpop.permute.xlu0 %526
        %528 = vrot.lane.b32.xlu0 %v218, 61
        %v529 = vpop.permute.xlu0 %528
        %v530 = vrot.slane %v527, 4
        %v531 = vrot.slane %v529, 4
        %v532 = vsel %vm237, %v530, %v531
        %vm533 = vcmask 498688
        %v534 = vsel %vm533, %v527, %v532
        %v535 = vsel %vm533, %v529, %v531
        %538 = vst [vmem:[#allocation2 + $0x84] sm:$0x33] %v534
        %539 = vst [vmem:[#allocation2 + $0x8c] sm:$0x3] %v535
        %540 = vrot.lane.b32.xlu0 %v230, 60
        %v541 = vpop.permute.xlu0 %540
        %542 = vrot.lane.b32.xlu0 %v211, 60
        %v543 = vpop.permute.xlu0 %542
        %v544 = vrot.slane %v541, 4
        %v545 = vrot.slane %v543, 4
        %v546 = vsel %vm237, %v544, %v545
        %vm547 = vcmask 490496
        %v548 = vsel %vm547, %v541, %v546
        %v549 = vsel %vm547, %v543, %v545
        %552 = vst [vmem:[#allocation2 + $0x84] sm:$0xcc] %v548
        %553 = vst [vmem:[#allocation2 + $0x8c] sm:$0xc] %v549
        %554 = vrot.lane.b32.xlu0 %v211, 59
        %v555 = vpop.permute.xlu0 %554
        %556 = vrot.lane.b32.xlu0 %v218, 59
        %v557 = vpop.permute.xlu0 %556
        %v558 = vrot.slane %v555, 4
        %v559 = vrot.slane %v557, 4
        %v560 = vsel %vm237, %v558, %v559
        %vm561 = vcmask 482304
        %v562 = vsel %vm561, %v555, %v560
        %v563 = vsel %vm561, %v557, %v559
        %566 = vst [vmem:[#allocation2 + $0x90] sm:$0x33] %v562
        %567 = vst [vmem:[#allocation2 + $0x98] sm:$0x3] %v563
        %568 = vrot.lane.b32.xlu0 %v230, 58
        %v569 = vpop.permute.xlu0 %568
        %570 = vrot.lane.b32.xlu0 %v211, 58
        %v571 = vpop.permute.xlu0 %570
        %v572 = vrot.slane %v569, 4
        %v573 = vrot.slane %v571, 4
        %v574 = vsel %vm237, %v572, %v573
        %vm575 = vcmask 474112
        %v576 = vsel %vm575, %v569, %v574
        %v577 = vsel %vm575, %v571, %v573
        %580 = vst [vmem:[#allocation2 + $0x90] sm:$0xcc] %v576
        %581 = vst [vmem:[#allocation2 + $0x98] sm:$0xc] %v577
        %582 = vrot.lane.b32.xlu0 %v211, 57
        %v583 = vpop.permute.xlu0 %582
        %584 = vrot.lane.b32.xlu0 %v218, 57
        %v585 = vpop.permute.xlu0 %584
        %v586 = vrot.slane %v583, 4
        %v587 = vrot.slane %v585, 4
        %v588 = vsel %vm237, %v586, %v587
        %vm589 = vcmask 465920
        %v590 = vsel %vm589, %v583, %v588
        %v591 = vsel %vm589, %v585, %v587
        %594 = vst [vmem:[#allocation2 + $0x9c] sm:$0x33] %v590
        %595 = vst [vmem:[#allocation2 + $0xa4] sm:$0x3] %v591
        %596 = vrot.lane.b32.xlu0 %v230, 56
        %v597 = vpop.permute.xlu0 %596
        %598 = vrot.lane.b32.xlu0 %v211, 56
        %v599 = vpop.permute.xlu0 %598
        %v600 = vrot.slane %v597, 4
        %v601 = vrot.slane %v599, 4
        %v602 = vsel %vm237, %v600, %v601
        %vm603 = vcmask 457728
        %v604 = vsel %vm603, %v597, %v602
        %v605 = vsel %vm603, %v599, %v601
        %608 = vst [vmem:[#allocation2 + $0x9c] sm:$0xcc] %v604
        %609 = vst [vmem:[#allocation2 + $0xa4] sm:$0xc] %v605
        %610 = vrot.lane.b32.xlu0 %v211, 40
        %v611 = vpop.permute.xlu0 %610
        %612 = vrot.lane.b32.xlu0 %v218, 40
        %v613 = vpop.permute.xlu0 %612
        %v614 = vrot.slane %v611, 4
        %v615 = vrot.slane %v613, 4
        %v616 = vsel %vm237, %v614, %v615
        %vm617 = vcmask 326656
        %v618 = vsel %vm617, %v611, %v616
        %v619 = vsel %vm617, %v613, %v615
        %622 = vst [vmem:[#allocation2 + $0xa8] sm:$0x33] %v618
        %623 = vst [vmem:[#allocation2 + $0xb0] sm:$0x3] %v619
        %624 = vrot.lane.b32.xlu0 %v230, 39
        %v625 = vpop.permute.xlu0 %624
        %626 = vrot.lane.b32.xlu0 %v211, 39
        %v627 = vpop.permute.xlu0 %626
        %v628 = vrot.slane %v625, 4
        %v629 = vrot.slane %v627, 4
        %v630 = vsel %vm237, %v628, %v629
        %vm631 = vcmask 318464
        %v632 = vsel %vm631, %v625, %v630
        %v633 = vsel %vm631, %v627, %v629
        %636 = vst [vmem:[#allocation2 + $0xa8] sm:$0xcc] %v632
        %637 = vst [vmem:[#allocation2 + $0xb0] sm:$0xc] %v633
        %638 = vrot.lane.b32.xlu0 %v211, 38
        %v639 = vpop.permute.xlu0 %638
        %640 = vrot.lane.b32.xlu0 %v218, 38
        %v641 = vpop.permute.xlu0 %640
        %v642 = vrot.slane %v639, 4
        %v643 = vrot.slane %v641, 4
        %v644 = vsel %vm237, %v642, %v643
        %vm645 = vcmask 310272
        %v646 = vsel %vm645, %v639, %v644
        %v647 = vsel %vm645, %v641, %v643
        %650 = vst [vmem:[#allocation2 + $0xb4] sm:$0x33] %v646
        %651 = vst [vmem:[#allocation2 + $0xbc] sm:$0x3] %v647
        %652 = vrot.lane.b32.xlu0 %v230, 37
        %v653 = vpop.permute.xlu0 %652
        %654 = vrot.lane.b32.xlu0 %v211, 37
        %v655 = vpop.permute.xlu0 %654
        %v656 = vrot.slane %v653, 4
        %v657 = vrot.slane %v655, 4
        %v658 = vsel %vm237, %v656, %v657
        %vm659 = vcmask 302080
        %v660 = vsel %vm659, %v653, %v658
        %v661 = vsel %vm659, %v655, %v657
        %664 = vst [vmem:[#allocation2 + $0xb4] sm:$0xcc] %v660
        %665 = vst [vmem:[#allocation2 + $0xbc] sm:$0xc] %v661
        %666 = vrot.lane.b32.xlu0 %v211, 36
        %v667 = vpop.permute.xlu0 %666
        %668 = vrot.lane.b32.xlu0 %v218, 36
        %v669 = vpop.permute.xlu0 %668
        %v670 = vrot.slane %v667, 4
        %v671 = vrot.slane %v669, 4
        %v672 = vsel %vm237, %v670, %v671
        %vm673 = vcmask 293888
        %v674 = vsel %vm673, %v667, %v672
        %v675 = vsel %vm673, %v669, %v671
        %678 = vst [vmem:[#allocation2 + $0xc0] sm:$0x33] %v674
        %679 = vst [vmem:[#allocation2 + $0xc8] sm:$0x3] %v675
        %680 = vrot.lane.b32.xlu0 %v230, 35
        %v681 = vpop.permute.xlu0 %680
        %682 = vrot.lane.b32.xlu0 %v211, 35
        %v683 = vpop.permute.xlu0 %682
        %v684 = vrot.slane %v681, 4
        %v685 = vrot.slane %v683, 4
        %v686 = vsel %vm237, %v684, %v685
        %vm687 = vcmask 285696
        %v688 = vsel %vm687, %v681, %v686
        %v689 = vsel %vm687, %v683, %v685
        %692 = vst [vmem:[#allocation2 + $0xc0] sm:$0xcc] %v688
        %693 = vst [vmem:[#allocation2 + $0xc8] sm:$0xc] %v689
        %694 = vrot.lane.b32.xlu0 %v211, 34
        %v695 = vpop.permute.xlu0 %694
        %696 = vrot.lane.b32.xlu0 %v218, 34
        %v697 = vpop.permute.xlu0 %696
        %v698 = vrot.slane %v695, 4
        %v699 = vrot.slane %v697, 4
        %v700 = vsel %vm237, %v698, %v699
        %vm701 = vcmask 277504
        %v702 = vsel %vm701, %v695, %v700
        %v703 = vsel %vm701, %v697, %v699
        %706 = vst [vmem:[#allocation2 + $0xcc] sm:$0x33] %v702
        %707 = vst [vmem:[#allocation2 + $0xd4] sm:$0x3] %v703
        %708 = vrot.lane.b32.xlu0 %v230, 18
        %v709 = vpop.permute.xlu0 %708
        %710 = vrot.lane.b32.xlu0 %v211, 18
        %v711 = vpop.permute.xlu0 %710
        %v712 = vrot.slane %v709, 4
        %v713 = vrot.slane %v711, 4
        %v714 = vsel %vm237, %v712, %v713
        %vm715 = vcmask 146432
        %v716 = vsel %vm715, %v709, %v714
        %v717 = vsel %vm715, %v711, %v713
        %720 = vst [vmem:[#allocation2 + $0xcc] sm:$0xcc] %v716
        %721 = vst [vmem:[#allocation2 + $0xd4] sm:$0xc] %v717
        %722 = vrot.lane.b32.xlu0 %v211, 17
        %v723 = vpop.permute.xlu0 %722
        %724 = vrot.lane.b32.xlu0 %v218, 17
        %v725 = vpop.permute.xlu0 %724
        %v726 = vrot.slane %v723, 4
        %v727 = vrot.slane %v725, 4
        %v728 = vsel %vm237, %v726, %v727
        %vm729 = vcmask 138240
        %v730 = vsel %vm729, %v723, %v728
        %v731 = vsel %vm729, %v725, %v727
        %734 = vst [vmem:[#allocation2 + $0xd8] sm:$0x33] %v730
        %735 = vst [vmem:[#allocation2 + $0xe0] sm:$0x3] %v731
        %736 = vrot.lane.b32.xlu0 %v230, 16
        %v737 = vpop.permute.xlu0 %736
        %738 = vrot.lane.b32.xlu0 %v211, 16
        %v739 = vpop.permute.xlu0 %738
        %v740 = vrot.slane %v737, 4
        %v741 = vrot.slane %v739, 4
        %v742 = vsel %vm237, %v740, %v741
        %vm743 = vcmask 130048
        %v744 = vsel %vm743, %v737, %v742
        %v745 = vsel %vm743, %v739, %v741
        %748 = vst [vmem:[#allocation2 + $0xd8] sm:$0xcc] %v744
        %749 = vst [vmem:[#allocation2 + $0xe0] sm:$0xc] %v745
        %750 = vrot.lane.b32.xlu0 %v211, 15
        %v751 = vpop.permute.xlu0 %750
        %752 = vrot.lane.b32.xlu0 %v218, 15
        %v753 = vpop.permute.xlu0 %752
        %v754 = vrot.slane %v751, 4
        %v755 = vrot.slane %v753, 4
        %v756 = vsel %vm237, %v754, %v755
        %vm757 = vcmask 121856
        %v758 = vsel %vm757, %v751, %v756
        %v759 = vsel %vm757, %v753, %v755
        %762 = vst [vmem:[#allocation2 + $0xe4] sm:$0x33] %v758
        %763 = vst [vmem:[#allocation2 + $0xec] sm:$0x3] %v759
        %764 = vrot.lane.b32.xlu0 %v230, 14
        %v765 = vpop.permute.xlu0 %764
        %766 = vrot.lane.b32.xlu0 %v211, 14
        %v767 = vpop.permute.xlu0 %766
        %v768 = vrot.slane %v765, 4
        %v769 = vrot.slane %v767, 4
        %v770 = vsel %vm237, %v768, %v769
        %vm771 = vcmask 113664
        %v772 = vsel %vm771, %v765, %v770
        %v773 = vsel %vm771, %v767, %v769
        %776 = vst [vmem:[#allocation2 + $0xe4] sm:$0xcc] %v772
        %777 = vst [vmem:[#allocation2 + $0xec] sm:$0xc] %v773
        %778 = vrot.lane.b32.xlu0 %v211, 13
        %v779 = vpop.permute.xlu0 %778
        %780 = vrot.lane.b32.xlu0 %v218, 13
        %v781 = vpop.permute.xlu0 %780
        %v782 = vrot.slane %v779, 4
        %v783 = vrot.slane %v781, 4
        %v784 = vsel %vm237, %v782, %v783
        %vm785 = vcmask 105472
        %v786 = vsel %vm785, %v779, %v784
        %v787 = vsel %vm785, %v781, %v783
        %790 = vst [vmem:[#allocation2 + $0xf0] sm:$0x33] %v786
        %791 = vst [vmem:[#allocation2 + $0xf8] sm:$0x3] %v787
        %792 = vrot.lane.b32.xlu0 %v230, 12
        %v793 = vpop.permute.xlu0 %792
        %794 = vrot.lane.b32.xlu0 %v211, 12
        %v795 = vpop.permute.xlu0 %794
        %v796 = vrot.slane %v793, 4
        %v797 = vrot.slane %v795, 4
        %v798 = vsel %vm237, %v796, %v797
        %vm799 = vcmask 97280
        %v800 = vsel %vm799, %v793, %v798
        %v801 = vsel %vm799, %v795, %v797
        %804 = vst [vmem:[#allocation2 + $0xf0] sm:$0xcc] %v800
        %805 = vst [vmem:[#allocation2 + $0xf8] sm:$0xc] %v801
        %v808 = vunpack.c.l.s4 1983009808
        %v809 = vunpack.c.0.s8 %v808
        %v810 = vlaneseq
        %v811 = vshrl.u32 %v810, 7
        %v812 = vsub.s32 %v809, %v811
        %v813 = vrot.slane %v202, %v812
        %814 = vrot.lane.b32.xlu0 %v813, 124
        %v815 = vpop.permute.xlu0 %814
        %v816 = vsel %vm281, %v280, %v277
        %v817 = vsel %vm281, %v279, %v815
        %820 = vst [vmem:[#allocation2 + $0xfc] sm:$0x33] %v816
        %821 = vst [vmem:[#allocation2 + $0x104] sm:$0x3] %v817
        %v822 = vcombine.low %v202, %v202
        %v824 = vunpack.c.l.s4 1983009808
        %v825 = vunpack.c.0.s8 %v824
        %v826 = vlaneseq
        %v827 = vshrl.u32 %v826, 7
        %v828 = vsub.s32 %v825, %v827
        %v829 = vrot.slane %v822, %v828
        %830 = vrot.lane.b32.xlu0 %v829, 123
        %v831 = vpop.permute.xlu0 %830
        %v832 = vsel %vm295, %v294, %v291
        %v833 = vsel %vm295, %v293, %v831
        %836 = vst [vmem:[#allocation2 + $0xfc] sm:$0xcc] %v832
        %837 = vst [vmem:[#allocation2 + $0x104] sm:$0xc] %v833
        %838 = vrot.lane.b32.xlu0 %v813, 122
        %v839 = vpop.permute.xlu0 %838
        %v840 = vsel %vm309, %v308, %v305
        %v841 = vsel %vm309, %v307, %v839
        %844 = vst [vmem:[#allocation2 + $0x108] sm:$0x33] %v840
        %845 = vst [vmem:[#allocation2 + $0x110] sm:$0x3] %v841
        %846 = vrot.lane.b32.xlu0 %v230, 121
        %v847 = vpop.permute.xlu0 %846
        %848 = vrot.lane.b32.xlu0 %v211, 121
        %v849 = vpop.permute.xlu0 %848
        %850 = vrot.lane.b32.xlu0 %v829, 121
        %v851 = vpop.permute.xlu0 %850
        %v852 = vrot.slane %v847, 4
        %v853 = vrot.slane %v849, 4
        %v854 = vsel %vm237, %v852, %v853
        %vm855 = vcmask 990208
        %v856 = vsel %vm855, %v854, %v849
        %v857 = vsel %vm855, %v853, %v851
        %860 = vst [vmem:[#allocation2 + $0x108] sm:$0xcc] %v856
        %861 = vst [vmem:[#allocation2 + $0x110] sm:$0xc] %v857
        %862 = vrot.lane.b32.xlu0 %v211, 120
        %v863 = vpop.permute.xlu0 %862
        %864 = vrot.lane.b32.xlu0 %v218, 120
        %v865 = vpop.permute.xlu0 %864
        %866 = vrot.lane.b32.xlu0 %v813, 120
        %v867 = vpop.permute.xlu0 %866
        %v868 = vrot.slane %v863, 4
        %v869 = vrot.slane %v865, 4
        %v870 = vsel %vm237, %v868, %v869
        %vm871 = vcmask 982016
        %v872 = vsel %vm871, %v870, %v865
        %v873 = vsel %vm871, %v869, %v867
        %876 = vst [vmem:[#allocation2 + $0x114] sm:$0x33] %v872
        %877 = vst [vmem:[#allocation2 + $0x11c] sm:$0x3] %v873
        %878 = vrot.lane.b32.xlu0 %v230, 119
        %v879 = vpop.permute.xlu0 %878
        %880 = vrot.lane.b32.xlu0 %v211, 119
        %v881 = vpop.permute.xlu0 %880
        %882 = vrot.lane.b32.xlu0 %v829, 119
        %v883 = vpop.permute.xlu0 %882
        %v884 = vrot.slane %v879, 4
        %v885 = vrot.slane %v881, 4
        %v886 = vsel %vm237, %v884, %v885
        %vm887 = vcmask 973824
        %v888 = vsel %vm887, %v886, %v881
        %v889 = vsel %vm887, %v885, %v883
        %892 = vst [vmem:[#allocation2 + $0x114] sm:$0xcc] %v888
        %893 = vst [vmem:[#allocation2 + $0x11c] sm:$0xc] %v889
        %894 = vrot.lane.b32.xlu0 %v211, 118
        %v895 = vpop.permute.xlu0 %894
        %896 = vrot.lane.b32.xlu0 %v218, 118
        %v897 = vpop.permute.xlu0 %896
        %898 = vrot.lane.b32.xlu0 %v813, 118
        %v899 = vpop.permute.xlu0 %898
        %v900 = vrot.slane %v895, 4
        %v901 = vrot.slane %v897, 4
        %v902 = vsel %vm237, %v900, %v901
        %vm903 = vcmask 965632
        %v904 = vsel %vm903, %v902, %v897
        %v905 = vsel %vm903, %v901, %v899
        %908 = vst [vmem:[#allocation2 + $0x120] sm:$0x33] %v904
        %909 = vst [vmem:[#allocation2 + $0x128] sm:$0x3] %v905
        %v910 = vld [vmem:[#allocation6] sm:$0xff]
        %v911 = vld [vmem:[#allocation2] sm:$0xff]
        %v912 = vld [vmem:[#allocation2 + $0x8] sm:$0xf]
        %v913 = vld [vmem:[#allocation2 + $0xc] sm:$0xff]
        %v914 = vld [vmem:[#allocation2 + $0x14] sm:$0xf]
        %v915 = vld [vmem:[#allocation2 + $0x18] sm:$0xff]
        %v916 = vld [vmem:[#allocation2 + $0x20] sm:$0xf]
        %v917 = vld [vmem:[#allocation2 + $0x24] sm:$0xff]
        %v918 = vld [vmem:[#allocation2 + $0x2c] sm:$0xf]
        %v919 = vld [vmem:[#allocation2 + $0x30] sm:$0xff]
        %v920 = vld [vmem:[#allocation2 + $0x38] sm:$0xf]
        %v921 = vld [vmem:[#allocation2 + $0x3c] sm:$0xff]
        %v922 = vld [vmem:[#allocation2 + $0x44] sm:$0xf]
        %v923 = vld [vmem:[#allocation2 + $0x48] sm:$0xff]
        %v924 = vld [vmem:[#allocation2 + $0x50] sm:$0xf]
        %v925 = vld [vmem:[#allocation2 + $0x54] sm:$0xff]
        %v926 = vld [vmem:[#allocation2 + $0x5c] sm:$0xf]
        %v927 = vld [vmem:[#allocation2 + $0x60] sm:$0xff]
        %v928 = vld [vmem:[#allocation2 + $0x68] sm:$0xf]
        %v929 = vld [vmem:[#allocation2 + $0x6c] sm:$0xff]
        %v930 = vld [vmem:[#allocation2 + $0x74] sm:$0xf]
        %v931 = vld [vmem:[#allocation2 + $0x78] sm:$0xff]
        %v932 = vld [vmem:[#allocation2 + $0x80] sm:$0xf]
        %v933 = vld [vmem:[#allocation2 + $0x84] sm:$0xff]
        %v934 = vld [vmem:[#allocation2 + $0x8c] sm:$0xf]
        %v935 = vld [vmem:[#allocation2 + $0x90] sm:$0xff]
        %v936 = vld [vmem:[#allocation2 + $0x98] sm:$0xf]
        %v937 = vld [vmem:[#allocation2 + $0x9c] sm:$0xff]
        %v938 = vld [vmem:[#allocation2 + $0xa4] sm:$0xf]
        %v939 = vld [vmem:[#allocation2 + $0xa8] sm:$0xff]
        %v940 = vld [vmem:[#allocation2 + $0xb0] sm:$0xf]
        %v941 = vld [vmem:[#allocation2 + $0xb4] sm:$0xff]
        %v942 = vld [vmem:[#allocation2 + $0xbc] sm:$0xf]
        %v943 = vld [vmem:[#allocation2 + $0xc0] sm:$0xff]
        %v944 = vld [vmem:[#allocation2 + $0xc8] sm:$0xf]
        %v945 = vld [vmem:[#allocation2 + $0xcc] sm:$0xff]
        %v946 = vld [vmem:[#allocation2 + $0xd4] sm:$0xf]
        %v947 = vld [vmem:[#allocation2 + $0xd8] sm:$0xff]
        %v948 = vld [vmem:[#allocation2 + $0xe0] sm:$0xf]
        %v949 = vld [vmem:[#allocation2 + $0xe4] sm:$0xff]
        %v950 = vld [vmem:[#allocation2 + $0xec] sm:$0xf]
        %v951 = vld [vmem:[#allocation2 + $0xf0] sm:$0xff]
        %v952 = vld [vmem:[#allocation2 + $0xf8] sm:$0xf]
        %v953 = vld [vmem:[#allocation2 + $0xfc] sm:$0xff]
        %v954 = vld [vmem:[#allocation2 + $0x104] sm:$0xf]
        %v955 = vld [vmem:[#allocation2 + $0x108] sm:$0xff]
        %v956 = vld [vmem:[#allocation2 + $0x110] sm:$0xf]
        %v957 = vld [vmem:[#allocation2 + $0x114] sm:$0xff]
        %v958 = vld [vmem:[#allocation2 + $0x11c] sm:$0xf]
        %v959 = vld [vmem:[#allocation2 + $0x120] sm:$0x33]
        %v960 = vld [vmem:[#allocation2 + $0x128] sm:$0x3]
        %v962 = vunpack.c.l.b16 %v910
        %v963 = vunpack.c.h.b16 %v910
        %v964 = vpack.c.b16 %v962, %v962
        %v965 = vpack.c.b16 %v963, %v963
        %v1017 = vunpack.c.l.b16 %v911
        %v1018 = vunpack.c.h.b16 %v911
        %v1019 = vunpack.c.l.b16 %v912
        %v1020 = vunpack.c.l.b16 %v913
        %v1021 = vunpack.c.h.b16 %v913
        %v1022 = vunpack.c.l.b16 %v914
        %v1023 = vunpack.c.l.b16 %v915
        %v1024 = vunpack.c.h.b16 %v915
        %v1025 = vunpack.c.l.b16 %v916
        %v1026 = vunpack.c.l.b16 %v917
        %v1027 = vunpack.c.h.b16 %v917
        %v1028 = vunpack.c.l.b16 %v918
        %v1029 = vunpack.c.l.b16 %v919
        %v1030 = vunpack.c.h.b16 %v919
        %v1031 = vunpack.c.l.b16 %v920
        %v1032 = vunpack.c.l.b16 %v921
        %v1033 = vunpack.c.h.b16 %v921
        %v1034 = vunpack.c.l.b16 %v922
        %v1035 = vunpack.c.l.b16 %v923
        %v1036 = vunpack.c.h.b16 %v923
        %v1037 = vunpack.c.l.b16 %v924
        %v1038 = vunpack.c.l.b16 %v925
        %v1039 = vunpack.c.h.b16 %v925
        %v1040 = vunpack.c.l.b16 %v926
        %v1041 = vunpack.c.l.b16 %v927
        %v1042 = vunpack.c.h.b16 %v927
        %v1043 = vunpack.c.l.b16 %v928
        %v1044 = vunpack.c.l.b16 %v929
        %v1045 = vunpack.c.h.b16 %v929
        %v1046 = vunpack.c.l.b16 %v930
        %v1047 = vunpack.c.l.b16 %v931
        %v1048 = vunpack.c.h.b16 %v931
        %v1049 = vunpack.c.l.b16 %v932
        %v1050 = vunpack.c.l.b16 %v933
        %v1051 = vunpack.c.h.b16 %v933
        %v1052 = vunpack.c.l.b16 %v934
        %v1053 = vunpack.c.l.b16 %v935
        %v1054 = vunpack.c.h.b16 %v935
        %v1055 = vunpack.c.l.b16 %v936
        %v1056 = vunpack.c.l.b16 %v937
        %v1057 = vunpack.c.h.b16 %v937
        %v1058 = vunpack.c.l.b16 %v938
        %v1059 = vunpack.c.l.b16 %v939
        %v1060 = vunpack.c.h.b16 %v939
        %v1061 = vunpack.c.l.b16 %v940
        %v1062 = vunpack.c.l.b16 %v941
        %v1063 = vunpack.c.h.b16 %v941
        %v1064 = vunpack.c.l.b16 %v942
        %v1065 = vunpack.c.l.b16 %v943
        %v1066 = vunpack.c.h.b16 %v943
        %v1067 = vunpack.c.l.b16 %v944
        %v1068 = vunpack.c.l.b16 %v945
        %v1069 = vunpack.c.h.b16 %v945
        %v1070 = vunpack.c.l.b16 %v946
        %v1071 = vunpack.c.l.b16 %v947
        %v1072 = vunpack.c.h.b16 %v947
        %v1073 = vunpack.c.l.b16 %v948
        %v1074 = vunpack.c.l.b16 %v949
        %v1075 = vunpack.c.h.b16 %v949
        %v1076 = vunpack.c.l.b16 %v950
        %v1077 = vunpack.c.l.b16 %v951
        %v1078 = vunpack.c.h.b16 %v951
        %v1079 = vunpack.c.l.b16 %v952
        %v1080 = vunpack.c.l.b16 %v953
        %v1081 = vunpack.c.h.b16 %v953
        %v1082 = vunpack.c.l.b16 %v954
        %v1083 = vunpack.c.l.b16 %v955
        %v1084 = vunpack.c.h.b16 %v955
        %v1085 = vunpack.c.l.b16 %v956
        %v1086 = vunpack.c.l.b16 %v957
        %v1087 = vunpack.c.h.b16 %v957
        %v1088 = vunpack.c.l.b16 %v958
        %v1089 = vunpack.c.l.b16 %v959
        %v1090 = vunpack.c.h.b16 %v959
        %v1091 = vunpack.c.l.b16 %v960
        %v1092 = vpack.c.b16 %v1020, %v1017
        %v1093 = vpack.c.b16 %v1021, %v1018
        %v1094 = vpack.c.b16 %v1022, %v1019
        %v1095 = vpack.c.b16 %v1026, %v1023
        %v1096 = vpack.c.b16 %v1027, %v1024
        %v1097 = vpack.c.b16 %v1028, %v1025
        %v1098 = vpack.c.b16 %v1032, %v1029
        %v1099 = vpack.c.b16 %v1033, %v1030
        %v1100 = vpack.c.b16 %v1034, %v1031
        %v1101 = vpack.c.b16 %v1038, %v1035
        %v1102 = vpack.c.b16 %v1039, %v1036
        %v1103 = vpack.c.b16 %v1040, %v1037
        %v1104 = vpack.c.b16 %v1044, %v1041
        %v1105 = vpack.c.b16 %v1045, %v1042
        %v1106 = vpack.c.b16 %v1046, %v1043
        %v1107 = vpack.c.b16 %v1050, %v1047
        %v1108 = vpack.c.b16 %v1051, %v1048
        %v1109 = vpack.c.b16 %v1052, %v1049
        %v1110 = vpack.c.b16 %v1056, %v1053
        %v1111 = vpack.c.b16 %v1057, %v1054
        %v1112 = vpack.c.b16 %v1058, %v1055
        %v1113 = vpack.c.b16 %v1062, %v1059
        %v1114 = vpack.c.b16 %v1063, %v1060
        %v1115 = vpack.c.b16 %v1064, %v1061
        %v1116 = vpack.c.b16 %v1068, %v1065
        %v1117 = vpack.c.b16 %v1069, %v1066
        %v1118 = vpack.c.b16 %v1070, %v1067
        %v1119 = vpack.c.b16 %v1074, %v1071
        %v1120 = vpack.c.b16 %v1075, %v1072
        %v1121 = vpack.c.b16 %v1076, %v1073
        %v1122 = vpack.c.b16 %v1080, %v1077
        %v1123 = vpack.c.b16 %v1081, %v1078
        %v1124 = vpack.c.b16 %v1082, %v1079
        %v1125 = vpack.c.b16 %v1086, %v1083
        %v1126 = vpack.c.b16 %v1087, %v1084
        %v1127 = vpack.c.b16 %v1088, %v1085
        %v1128 = vpack.c.b16 %v1089, %v1089
        %v1129 = vpack.c.b16 %v1090, %v1090
        %v1130 = vpack.c.b16 %v1091, %v1091
        %vm1167 = vcmask 556032
        %v1169 = vsel %vm1167, %v965, 0
        %vm1171 = vcmask 1041408
        %v1173 = vsel %vm1171, %v1128, 0
        %v1176 = vsel %vm1171, %v1129, 0
        %v1179 = vsel %vm1171, %v1130, 0
        %1181 = vmatprep.subr.bf16.mxu0 %v1114
        %1182 = vmatpush1.bf16.msra.mxu0 %v1113
        %1183 = vmatprep.subr.bf16.mxu0 %v1111
        %1184 = vmatpush1.bf16.msra.mxu0 %v1110
        %1185 = vmatprep.subr.bf16.mxu0 %v1108
        %1186 = vmatpush1.bf16.msra.mxu0 %v1107
        %1187 = vmatprep.subr.bf16.mxu0 %v1105
        %1188 = vmatpush1.bf16.msra.mxu0 %v1104
        %1189 = vmatprep.subr.bf16.mxu0 %v1102
        %1190 = vmatpush1.bf16.msra.mxu0 %v1101
        %1191 = vmatprep.subr.bf16.mxu0 %v1099
        %1192 = vmatpush1.bf16.msra.mxu0 %v1098
        %1193 = vmatprep.subr.bf16.mxu0 %v1096
        %1194 = vmatpush1.bf16.msra.mxu0 %v1095
        %1195 = vmatprep.subr.bf16.mxu0 %v1093
        %1196 = vmatpush1.bf16.msra.mxu0 %v1092
        %1197 = vmatprep.subr.bf16.mxu0 0
        %1198 = vmatpush2.bf16.msra.mxu0 0
        %1199 = vmatprep.subr.bf16.mxu0 0
        %1200 = vmatpush2.bf16.msra.mxu0 0
        %1201 = vmatprep.subr.bf16.mxu0 0
        %1202 = vmatpush2.bf16.msra.mxu0 0
        %1203 = vmatprep.subr.bf16.mxu0 %v1176
        %1204 = vmatpush2.bf16.msra.mxu0 %v1173
        %1205 = vmatprep.subr.bf16.mxu0 %v1126
        %1206 = vmatpush2.bf16.msra.mxu0 %v1125
        %1207 = vmatprep.subr.bf16.mxu0 %v1123
        %1208 = vmatpush2.bf16.msra.mxu0 %v1122
        %1209 = vmatprep.subr.bf16.mxu0 %v1120
        %1210 = vmatpush2.bf16.msra.mxu0 %v1119
        %1211 = vmatprep.subr.bf16.mxu0 %v1117
        %1212 = vmatpush2.bf16.msra.mxu0 %v1116
        %1213 = vmatprep.mubr.bf16.mxu0 %v1169
        %1214 = vmatmul.mubr.bf16.gmra.mxu0 %v964
        %v1215 = vpop.f32.mrf.mxu0
        %v1216 = vadd.f32 0.0, %v1215
        %v1217 = vpop.f32.mrf.mxu0
        %v1218 = vadd.f32 0.0, %v1217
        %v1219 = vpop.f32.mrf.mxu0
        %v1220 = vpop.f32.mrf.mxu0
        %1221 = vdwg.mxu0
        %1222 = vmatprep.subr.bf16.mxu0 0
        %1223 = vmatpush1.bf16.msra.mxu0 %v1115
        %1224 = vmatprep.subr.bf16.mxu0 0
        %1225 = vmatpush1.bf16.msra.mxu0 %v1112
        %1226 = vmatprep.subr.bf16.mxu0 0
        %1227 = vmatpush1.bf16.msra.mxu0 %v1109
        %1228 = vmatprep.subr.bf16.mxu0 0
        %1229 = vmatpush1.bf16.msra.mxu0 %v1106
        %1230 = vmatprep.subr.bf16.mxu0 0
        %1231 = vmatpush1.bf16.msra.mxu0 %v1103
        %1232 = vmatprep.subr.bf16.mxu0 0
        %1233 = vmatpush1.bf16.msra.mxu0 %v1100
        %1234 = vmatprep.subr.bf16.mxu0 0
        %1235 = vmatpush1.bf16.msra.mxu0 %v1097
        %1236 = vmatprep.subr.bf16.mxu0 0
        %1237 = vmatpush1.bf16.msra.mxu0 %v1094
        %1238 = vmatprep.subr.bf16.mxu0 0
        %1239 = vmatpush2.bf16.msra.mxu0 0
        %1240 = vmatprep.subr.bf16.mxu0 0
        %1241 = vmatpush2.bf16.msra.mxu0 0
        %1242 = vmatprep.subr.bf16.mxu0 0
        %1243 = vmatpush2.bf16.msra.mxu0 0
        %1244 = vmatprep.subr.bf16.mxu0 0
        %1245 = vmatpush2.bf16.msra.mxu0 %v1179
        %1246 = vmatprep.subr.bf16.mxu0 0
        %1247 = vmatpush2.bf16.msra.mxu0 %v1127
        %1248 = vmatprep.subr.bf16.mxu0 0
        %1249 = vmatpush2.bf16.msra.mxu0 %v1124
        %1250 = vmatprep.subr.bf16.mxu0 0
        %1251 = vmatpush2.bf16.msra.mxu0 %v1121
        %1252 = vmatprep.subr.bf16.mxu0 0
        %1253 = vmatpush2.bf16.msra.mxu0 %v1118
        %1254 = vmatprep.mubr.bf16.mxu0 %v1169
        %1255 = vmatmul.mubr.bf16.gmra.mxu0 %v964
        %v1256 = vpop.f32.mrf.mxu0
        %v1257 = vadd.f32 0.0, %v1256
        %v1258 = vpop.f32.mrf.mxu0
        %v1259 = vpop.f32.mrf.mxu0
        %v1260 = vpop.f32.mrf.mxu0
        %1261 = vdwg.mxu0
        %v1262 = vld [vmem:[%s2] sm:$0x7]
        %v1264 = vlaneseq
        %v1265 = vshrl.u32 %v1264, 7
        %v1266 = vsub.s32 0, %v1265
        %v1267 = vrot.slane %v1262, %v1266
        %v1268 = vlaneseq
        %v1269 = vshrl.u32 %v1268, 7
        %v1270 = vsub.s32 1, %v1269
        %v1271 = vrot.slane %v1262, %v1270
        %v1272 = vlaneseq
        %v1273 = vshrl.u32 %v1272, 7
        %v1274 = vsub.s32 2, %v1273
        %v1275 = vrot.slane %v1262, %v1274
        %v1279 = vmul.f32 %v1216, %v1267
        %v1280 = vmul.f32 %v1218, %v1271
        %v1281 = vmul.f32 %v1257, %v1275
        %v1282 = vadd.f32 %v1279, %v1280
        %v1283 = vadd.f32 %v1282, %v1281
        %1284 = vadd.xlane.f32.xlu0 %v1283
        %v1285 = vpop.xlane.xlu0 %1284
        %v1286 = vmul.f32 %v1285, 0.00390625
        %v1287 = vmul.f32 %v1279, %v1279
        %v1288 = vmul.f32 %v1280, %v1280
        %v1289 = vmul.f32 %v1281, %v1281
        %v1290 = vadd.f32 %v1287, %v1288
        %v1291 = vadd.f32 %v1290, %v1289
        %1292 = vadd.xlane.f32.xlu0 %v1291
        %v1293 = vpop.xlane.xlu0 %1292
        %v1294 = vmul.f32 %v1293, 0.00390625
        %v1295 = vmul.f32 %v1286, %v1286
        %v1296 = vsub.f32 %v1294, %v1295
        %v1297 = vsub.f32 %v1216, %v1286
        %v1298 = vsub.f32 %v1218, %v1286
        %v1299 = vsub.f32 %v1257, %v1286
        %v1300 = vadd.f32 %v1296, 1e-05
        %v1301 = vrsqrt.pop %v1300
        %v1302 = vmul.f32 %v1297, %v1301
        %v1303 = vmul.f32 %v1298, %v1301
        %v1304 = vmul.f32 %v1299, %v1301
        %v1305 = vmax.f32 %v1302, 0.0
        %v1306 = vmax.f32 %v1303, 0.0
        %v1307 = vmax.f32 %v1304, 0.0
        %1308 = vst [vmem:[%s199] sm:$0xff] %v1305
        %1309 = vst [vmem:[%s199 + $0x8] sm:$0xff] %v1306
        %1310 = vst [vmem:[%s199 + $0x10] sm:$0xff] %v1307
        %s1311 = sand.u32 %s97, 1
        %s1312 = scalar_lea.sflag [#allocation5], %s1311
        %s1313 = sand.u32 %s97, 1
        %s1314 = smul.addr %s1313, 24
        %s1315 = scalar_lea.vmem [#allocation8], %s1314
        // Predicated region
        $region41: #{tpu_custom_call.1} parent=31 // pred_check
          %p1316 = pneg %p107
        $region42: #{tpu_custom_call.1} parent=31 // pred_check_branch
          %1318 = sbr.rel (%p1316) target = $region44
        $region43: #{tpu_custom_call.1} parent=31 // pred_region
          %s1320 = ssub.s32 384, 384
          %1321 = vsyncadd %s1312, %s1320
          %s1322 = smul.addr %s21, 3
          %s1323 = smul.addr %s1322, 128
          %s1324 = scalar_lea.hbm %s3, %s1323
          %s1326 = sshll.u32 %s1315, 4
          %s1327 = int_to_ptr.vmem [resolvable:$true] %s1326
          %1329 = dma.vmem_to_hbm [thread:$0]  %s1327, 384, %s1324, %s1312
        $region44: #{tpu_custom_call.1} parent=31 // pred_fallthru
          _
      $region32: #{tpu_custom_call.1} parent=5 // pred_fallthru
        _
      %p1330 = scmp.le.s32.totalorder 2, %s16
      // Predicated region
      $region45: #{tpu_custom_call.1} parent=5 // pred_check
        %p1331 = pneg %p1330
      $region46: #{tpu_custom_call.1} parent=5 // pred_check_branch
        %1333 = sbr.rel (%p1331) target = $region48
      $region47: #{tpu_custom_call.1} parent=5 // pred_region
        %s1334 = ssub.s32 %s16, 2
        // Predicated region
        $region49: #{tpu_custom_call.1} parent=47 // pred_check
          %p1335 = pneg %p113
        $region50: #{tpu_custom_call.1} parent=47 // pred_check_branch
          %1337 = sbr.rel (%p1335) target = $region52
        $region51: #{tpu_custom_call.1} parent=47 // pred_region
          %s1338 = sand.u32 %s98, 1
          %s1339 = scalar_lea.sflag [#allocation5], %s1338
          %s1340 = sand.u32 %s98, 1
          %s1341 = smul.addr %s1340, 24
          %s1342 = scalar_lea.vmem [#allocation8], %s1341
          %1343 = dma.done %s1339, 384
        $region52: #{tpu_custom_call.1} parent=47 // pred_fallthru
          _
      $region48: #{tpu_custom_call.1} parent=5 // pred_fallthru
        _
    $region6: #{tpu_custom_call.1} parent=1 // loop_footer
      %s20 = sadd.s32 1, %s16
    $region7: #{tpu_custom_call.1} parent=1 // loop_footer_branch
      %15 = sbr.rel target = $region3
    $region8: #{tpu_custom_call.1} parent=1 // loop_exit
      _
    %1344 = vsyncpa [#allocation4], 1
    %s1345 = scalar_lea.sflag [#allocation4], 1
    %1346 = vsyncpa %s1345, 1
    %1347 = vsyncpa [#allocation7], 1
    %1348 = vsyncpa [#allocation5], 1
    %s1349 = scalar_lea.sflag [#allocation5], 1
    %1350 = vsyncpa %s1349, 1

</llo_original>
